<compile_context>
chip_gen: v7x
topology: tpu7x:2x2x1
jax: 0.10.0
libtpu: 0.0.40
codegen_flags: <defaults>
</compile_context>

<pallas_src>
import functools

import jax
import jax.numpy as jnp
from jax.experimental import pallas as pl
from jax.experimental.pallas import tpu as pltpu


def _cheby2d_kernel(coef_re_ref, coef_im_ref,        # SMEM, flat (n_branch*(order+1)^2,)
                    xp_re_ref, xc_re_ref,            # VMEM (R, 128): previous / current tile
                    xp_im_ref, xc_im_ref,
                    out_re_ref, out_im_ref,          # VMEM (R, 128)
                    w_re_ref, w_im_ref,              # VMEM scratch (2R, 128): haloed window
                    *, order, delays, rows):
    K = order + 1
    R = rows

    # Haloed time window W = [previous tile | current tile], flat time = row*128 + lane.
    w_re_ref[:R, :] = xp_re_ref[...]
    w_re_ref[R:, :] = xc_re_ref[...]
    w_im_ref[:R, :] = xp_im_ref[...]
    w_im_ref[R:, :] = xc_im_ref[...]

    col = jax.lax.broadcasted_iota(jnp.int32, (R, 128), 1)

    # Delayed-signal planes, dedup'd across branches.  delay d = q*128 + s:
    #   rows shift by q (sublane slice of W), lanes shift by s (XLU roll + select).
    delayed = {}

    def get_delayed(d):
        if d not in delayed:
            q, s = divmod(d, 128)
            lo = R - q
            if s == 0:
                delayed[d] = (w_re_ref[lo:lo + R, :], w_im_ref[lo:lo + R, :])
            else:
                planes = []
                for w_ref in (w_re_ref, w_im_ref):
                    a = w_ref[lo:lo + R, :]              # rows shifted by q
                    b = w_ref[lo - 1:lo - 1 + R, :]      # rows shifted by q + 1
                    ra = pltpu.roll(a, shift=s, axis=1)
                    rb = pltpu.roll(b, shift=s, axis=1)
                    planes.append(jnp.where(col >= s, ra, rb))
                delayed[d] = tuple(planes)
        return delayed[d]

    mags = {}

    def get_mag(d):
        if d not in mags:
            re, im = get_delayed(d)
            mags[d] = jnp.sqrt(re * re + im * im)
        return mags[d]

    acc_re = jnp.zeros((R, 128), jnp.float32)
    acc_im = jnp.zeros((R, 128), jnp.float32)

    for j, (d_out, d1, d2) in enumerate(delays):
        r1 = get_mag(d1)
        r2 = get_mag(d2)

        # Chebyshev T_n(r2) for n = 1..K-1 (T_0 == 1 is kept as the scalar 1.0).
        t2 = [None, r2]
        if K > 2:
            two_r2 = r2 + r2
            for k in range(2, K):
                prev2 = 1.0 if k == 2 else t2[k - 2]
                t2.append(two_r2 * t2[k - 1] - prev2)

        # Factored contraction: g = sum_m T1[m] * (sum_n C[m,n] * T2[n]),
        # streaming the T1 recurrence to keep only two live T1 arrays.
        base = j * K * K
        two_r1 = r1 + r1 if K > 2 else None
        t1_m2 = None
        t1_m1 = None
        g_re = None
        g_im = None
        for m in range(K):
            if m == 0:
                t1m = 1.0
            elif m == 1:
                t1m = r1
            else:
                t1m = two_r1 * t1_m1 - t1_m2     # t1_m2 may be the scalar 1.0 (m == 2)

            inner_re = None
            inner_im = None
            for n in range(K - 1, 0, -1):
                cre = coef_re_ref[base + m * K + n]      # scalar read from SMEM
                cim = coef_im_ref[base + m * K + n]
                if inner_re is None:
                    inner_re = cre * t2[n]
                    inner_im = cim * t2[n]
                else:
                    inner_re = inner_re + cre * t2[n]
                    inner_im = inner_im + cim * t2[n]
            c0_re = coef_re_ref[base + m * K]            # n == 0 term: T2[0] == 1
            c0_im = coef_im_ref[base + m * K]
            if inner_re is None:                         # K == 1 edge case
                inner_re, inner_im = c0_re, c0_im
            else:
                inner_re = inner_re + c0_re
                inner_im = inner_im + c0_im

            if m == 0:                                   # T1[0] == 1
                g_re = inner_re
                g_im = inner_im
            else:
                g_re = g_re + t1m * inner_re
                g_im = g_im + t1m * inner_im

            t1_m2, t1_m1 = t1_m1, t1m

        # Complex multiply-accumulate: acc += y_j * g_j.
        y_re, y_im = get_delayed(d_out)
        acc_re = acc_re + (y_re * g_re - y_im * g_im)
        acc_im = acc_im + (y_re * g_im + y_im * g_re)

    out_re_ref[...] = acc_re
    out_im_ref[...] = acc_im


def parallel_cheby2d(x, coeffs, delays, *, tile_t=2048):
    """x: complex64 (B, 1, T); coeffs: complex64 (n_branch, order+1, order+1)."""
    B, C, T = x.shape
    assert C == 1
    K = coeffs.shape[1]
    order = K - 1
    delays = tuple(tuple(int(v) for v in d) for d in delays)

    assert tile_t % 128 == 0
    R = tile_t // 128
    max_d = max(max(d) for d in delays)
    assert 0 <= max_d < tile_t, "delays must be non-negative and smaller than tile_t"

    nsteps = -(-T // tile_t)           # ceil-div
    T_pad = nsteps * tile_t
    P = T_pad // 128                   # data rows per batch
    blocks_per_batch = nsteps + 1      # halo block + data blocks, per batch

    sig = x[:, 0, :]                   # (B, T) complex

    def prep(plane):                   # (B, T) f32 -> (B*(R+P), 128), zero halo in front
        plane = plane.astype(jnp.float32)
        plane = jnp.pad(plane, ((0, 0), (0, T_pad - T)))
        plane = plane.reshape(B, P, 128)
        plane = jnp.pad(plane, ((0, 0), (R, 0), (0, 0)))
        return plane.reshape(B * (P + R), 128)

    x_re = prep(jnp.real(sig))
    x_im = prep(jnp.imag(sig))
    coef_re = jnp.real(coeffs).astype(jnp.float32).reshape(-1)
    coef_im = jnp.imag(coeffs).astype(jnp.float32).reshape(-1)

    prev_spec = pl.BlockSpec((R, 128), lambda b, i: (b * blocks_per_batch + i, 0))
    cur_spec = pl.BlockSpec((R, 128), lambda b, i: (b * blocks_per_batch + i + 1, 0))
    out_spec = pl.BlockSpec((R, 128), lambda b, i: (b * nsteps + i, 0))
    smem_spec = pl.BlockSpec(memory_space=pltpu.MemorySpace.SMEM)

    kernel = functools.partial(_cheby2d_kernel, order=order, delays=delays, rows=R)

    out_re, out_im = pl.pallas_call(
        kernel,
        out_shape=(jax.ShapeDtypeStruct((B * P, 128), jnp.float32),
                   jax.ShapeDtypeStruct((B * P, 128), jnp.float32)),
        grid=(B, nsteps),
        in_specs=[smem_spec, smem_spec, prev_spec, cur_spec, prev_spec, cur_spec],
        out_specs=(out_spec, out_spec),
        scratch_shapes=[pltpu.VMEM((2 * R, 128), jnp.float32),
                        pltpu.VMEM((2 * R, 128), jnp.float32)],
        compiler_params=pltpu.CompilerParams(
            dimension_semantics=("parallel", "parallel"),
            vmem_limit_bytes=32 * 1024 * 1024),
    )(coef_re, coef_im, x_re, x_re, x_im, x_im)

    out = (out_re + 1j * out_im).astype(jnp.complex64)
    out = out.reshape(B, T_pad)[:, :T]
    return out[:, None, :]             # (B, 1, T)


def _delay_ref(sig, d):
    """Zero-padded delay: y(t) = x(t-d) for t >= d else 0.  sig: (B, T)."""
    if d == 0:
        return sig
    B, T = sig.shape
    return jnp.concatenate([jnp.zeros((B, d), sig.dtype), sig[:, : T - d]], axis=1)


def parallel_cheby2d_ref(x, coeffs, delays):
    """Pure-JAX reference (same semantics), for correctness check."""
    B, _, T = x.shape
    K = coeffs.shape[1]
    sig = x[:, 0, :]
    out = jnp.zeros((B, T), jnp.complex64)
    for j, (d_out, d1, d2) in enumerate(delays):
        y = _delay_ref(sig, d_out)
        r1 = jnp.abs(_delay_ref(sig, d1))
        r2 = jnp.abs(_delay_ref(sig, d2))
        T1 = [jnp.ones_like(r1), r1]
        T2 = [jnp.ones_like(r2), r2]
        for k in range(2, K):
            T1.append(2.0 * r1 * T1[k - 1] - T1[k - 2])
            T2.append(2.0 * r2 * T2[k - 1] - T2[k - 2])
        g = jnp.zeros_like(out)
        for m in range(K):
            for n in range(K):
                g = g + coeffs[j, m, n] * (T1[m] * T2[n])
        out = out + y * g
    return out[:, None, :]


if __name__ == "__main__":
    # order=3, 3 branches each with [d_out, d_in1, d_in2].
    order = 3
    delays = [[0, 1, 2], [1, 0, 3], [2, 2, 1]]
    n_branch = len(delays)
    B, T = 2, 8192

    key = jax.random.PRNGKey(0)
    kx_r, kx_i, kc_r, kc_i = jax.random.split(key, 4)
    x = (0.5 * jax.random.normal(kx_r, (B, 1, T), jnp.float32)
         + 0.5j * jax.random.normal(kx_i, (B, 1, T), jnp.float32)).astype(jnp.complex64)
    coeffs = (0.1 * jax.random.normal(kc_r, (n_branch, order + 1, order + 1), jnp.float32)
              + 0.1j * jax.random.normal(kc_i, (n_branch, order + 1, order + 1),
                                         jnp.float32)).astype(jnp.complex64)

    out = parallel_cheby2d(x, coeffs, delays, tile_t=2048)
    out = jax.block_until_ready(out)

    ref = parallel_cheby2d_ref(x, coeffs, delays)
    assert out.shape == (B, 1, T) and out.dtype == jnp.complex64
    assert jnp.allclose(out, ref, atol=1e-3, rtol=1e-3)

    print("KERNEL_OK")
</pallas_src>

<mosaic_0001>
module attributes {stable_mosaic.version = 11 : i64} {
  func.func @_cheby2d_kernel(%arg0: i32, %arg1: i32, %arg2: memref<48xf32, #tpu.memory_space<smem>>, %arg3: memref<48xf32, #tpu.memory_space<smem>>, %arg4: memref<16x128xf32, #tpu.memory_space<vmem>>, %arg5: memref<16x128xf32, #tpu.memory_space<vmem>>, %arg6: memref<16x128xf32, #tpu.memory_space<vmem>>, %arg7: memref<16x128xf32, #tpu.memory_space<vmem>>, %arg8: memref<16x128xf32, #tpu.memory_space<vmem>>, %arg9: memref<16x128xf32, #tpu.memory_space<vmem>>, %arg10: memref<32x128xf32, #tpu.memory_space<vmem>>, %arg11: memref<32x128xf32, #tpu.memory_space<vmem>>) attributes {dimension_semantics = [#tpu.dimension_semantics<parallel>, #tpu.dimension_semantics<parallel>], iteration_bounds = array<i64: 2, 4>, scalar_prefetch = 0 : i64, scratch_operands = 2 : i64, tpu.core_type = #tpu.core_type<tc>, window_params = [{transform_indices = @transform_0, window_bounds = array<i64: 48>}, {transform_indices = @transform_1, window_bounds = array<i64: 48>}, {transform_indices = @transform_2, window_bounds = array<i64: 16, 128>}, {transform_indices = @transform_3, window_bounds = array<i64: 16, 128>}, {transform_indices = @transform_4, window_bounds = array<i64: 16, 128>}, {transform_indices = @transform_5, window_bounds = array<i64: 16, 128>}, {transform_indices = @transform_6, window_bounds = array<i64: 16, 128>}, {transform_indices = @transform_7, window_bounds = array<i64: 16, 128>}]} {
    %c0 = arith.constant 0 : index
    %c0_0 = arith.constant 0 : index
    %0 = vector.load %arg4[%c0, %c0_0] : memref<16x128xf32, #tpu.memory_space<vmem>>, vector<16x128xf32>
    %c0_1 = arith.constant 0 : index
    %c0_2 = arith.constant 0 : index
    %1 = vector.load %arg10[%c0_1, %c0_2] : memref<32x128xf32, #tpu.memory_space<vmem>>, vector<16x128xf32>
    tpu.vector_store %arg10[%c0_1, %c0_2], %0 {strides = array<i32>} : memref<32x128xf32, #tpu.memory_space<vmem>>, vector<16x128xf32>,
    %c0_3 = arith.constant 0 : index
    %c0_4 = arith.constant 0 : index
    %2 = vector.load %arg5[%c0_3, %c0_4] : memref<16x128xf32, #tpu.memory_space<vmem>>, vector<16x128xf32>
    %c16 = arith.constant 16 : index
    %c0_5 = arith.constant 0 : index
    %3 = vector.load %arg10[%c16, %c0_5] : memref<32x128xf32, #tpu.memory_space<vmem>>, vector<16x128xf32>
    tpu.vector_store %arg10[%c16, %c0_5], %2 {strides = array<i32>} : memref<32x128xf32, #tpu.memory_space<vmem>>, vector<16x128xf32>,
    %c0_6 = arith.constant 0 : index
    %c0_7 = arith.constant 0 : index
    %4 = vector.load %arg6[%c0_6, %c0_7] : memref<16x128xf32, #tpu.memory_space<vmem>>, vector<16x128xf32>
    %c0_8 = arith.constant 0 : index
    %c0_9 = arith.constant 0 : index
    %5 = vector.load %arg11[%c0_8, %c0_9] : memref<32x128xf32, #tpu.memory_space<vmem>>, vector<16x128xf32>
    tpu.vector_store %arg11[%c0_8, %c0_9], %4 {strides = array<i32>} : memref<32x128xf32, #tpu.memory_space<vmem>>, vector<16x128xf32>,
    %c0_10 = arith.constant 0 : index
    %c0_11 = arith.constant 0 : index
    %6 = vector.load %arg7[%c0_10, %c0_11] : memref<16x128xf32, #tpu.memory_space<vmem>>, vector<16x128xf32>
    %c16_12 = arith.constant 16 : index
    %c0_13 = arith.constant 0 : index
    %7 = vector.load %arg11[%c16_12, %c0_13] : memref<32x128xf32, #tpu.memory_space<vmem>>, vector<16x128xf32>
    tpu.vector_store %arg11[%c16_12, %c0_13], %6 {strides = array<i32>} : memref<32x128xf32, #tpu.memory_space<vmem>>, vector<16x128xf32>,
    %8 = tpu.iota {dimensions = array<i32: 1>} : vector<16x128xi32>
    %cst = arith.constant 0.000000e+00 : f32
    %9 = vector.broadcast %cst : f32 to vector<16x128xf32>
    %cst_14 = arith.constant 0.000000e+00 : f32
    %10 = vector.broadcast %cst_14 : f32 to vector<16x128xf32>
    %c16_15 = arith.constant 16 : index
    %c0_16 = arith.constant 0 : index
    %11 = vector.load %arg10[%c16_15, %c0_16] : memref<32x128xf32, #tpu.memory_space<vmem>>, vector<16x128xf32>
    %c15 = arith.constant 15 : index
    %c0_17 = arith.constant 0 : index
    %12 = vector.load %arg10[%c15, %c0_17] : memref<32x128xf32, #tpu.memory_space<vmem>>, vector<16x128xf32>
    %c1_i32 = arith.constant 1 : i32
    %13 = tpu.dynamic_rotate %11 by %c1_i32 dim 1 : vector<16x128xf32>, i32 -> vector<16x128xf32>
    %c1_i32_18 = arith.constant 1 : i32
    %14 = tpu.dynamic_rotate %12 by %c1_i32_18 dim 1 : vector<16x128xf32>, i32 -> vector<16x128xf32>
    %c1_i32_19 = arith.constant 1 : i32
    %15 = vector.broadcast %c1_i32_19 : i32 to vector<16x128xi32>
    %16 = arith.cmpi sge, %8, %15 : vector<16x128xi32>
    %17 = arith.select %16, %13, %14 : vector<16x128xi1>, vector<16x128xf32>
    %c16_20 = arith.constant 16 : index
    %c0_21 = arith.constant 0 : index
    %18 = vector.load %arg11[%c16_20, %c0_21] : memref<32x128xf32, #tpu.memory_space<vmem>>, vector<16x128xf32>
    %c15_22 = arith.constant 15 : index
    %c0_23 = arith.constant 0 : index
    %19 = vector.load %arg11[%c15_22, %c0_23] : memref<32x128xf32, #tpu.memory_space<vmem>>, vector<16x128xf32>
    %c1_i32_24 = arith.constant 1 : i32
    %20 = tpu.dynamic_rotate %18 by %c1_i32_24 dim 1 : vector<16x128xf32>, i32 -> vector<16x128xf32>
    %c1_i32_25 = arith.constant 1 : i32
    %21 = tpu.dynamic_rotate %19 by %c1_i32_25 dim 1 : vector<16x128xf32>, i32 -> vector<16x128xf32>
    %c1_i32_26 = arith.constant 1 : i32
    %22 = vector.broadcast %c1_i32_26 : i32 to vector<16x128xi32>
    %23 = arith.cmpi sge, %8, %22 : vector<16x128xi32>
    %24 = arith.select %23, %20, %21 : vector<16x128xi1>, vector<16x128xf32>
    %25 = arith.mulf %17, %17 : vector<16x128xf32>
    %26 = arith.mulf %24, %24 : vector<16x128xf32>
    %27 = arith.addf %25, %26 : vector<16x128xf32>
    %28 = math.sqrt %27 : vector<16x128xf32>
    %c16_27 = arith.constant 16 : index
    %c0_28 = arith.constant 0 : index
    %29 = vector.load %arg10[%c16_27, %c0_28] : memref<32x128xf32, #tpu.memory_space<vmem>>, vector<16x128xf32>
    %c15_29 = arith.constant 15 : index
    %c0_30 = arith.constant 0 : index
    %30 = vector.load %arg10[%c15_29, %c0_30] : memref<32x128xf32, #tpu.memory_space<vmem>>, vector<16x128xf32>
    %c2_i32 = arith.constant 2 : i32
    %31 = tpu.dynamic_rotate %29 by %c2_i32 dim 1 : vector<16x128xf32>, i32 -> vector<16x128xf32>
    %c2_i32_31 = arith.constant 2 : i32
    %32 = tpu.dynamic_rotate %30 by %c2_i32_31 dim 1 : vector<16x128xf32>, i32 -> vector<16x128xf32>
    %c2_i32_32 = arith.constant 2 : i32
    %33 = vector.broadcast %c2_i32_32 : i32 to vector<16x128xi32>
    %34 = arith.cmpi sge, %8, %33 : vector<16x128xi32>
    %35 = arith.select %34, %31, %32 : vector<16x128xi1>, vector<16x128xf32>
    %c16_33 = arith.constant 16 : index
    %c0_34 = arith.constant 0 : index
    %36 = vector.load %arg11[%c16_33, %c0_34] : memref<32x128xf32, #tpu.memory_space<vmem>>, vector<16x128xf32>
    %c15_35 = arith.constant 15 : index
    %c0_36 = arith.constant 0 : index
    %37 = vector.load %arg11[%c15_35, %c0_36] : memref<32x128xf32, #tpu.memory_space<vmem>>, vector<16x128xf32>
    %c2_i32_37 = arith.constant 2 : i32
    %38 = tpu.dynamic_rotate %36 by %c2_i32_37 dim 1 : vector<16x128xf32>, i32 -> vector<16x128xf32>
    %c2_i32_38 = arith.constant 2 : i32
    %39 = tpu.dynamic_rotate %37 by %c2_i32_38 dim 1 : vector<16x128xf32>, i32 -> vector<16x128xf32>
    %c2_i32_39 = arith.constant 2 : i32
    %40 = vector.broadcast %c2_i32_39 : i32 to vector<16x128xi32>
    %41 = arith.cmpi sge, %8, %40 : vector<16x128xi32>
    %42 = arith.select %41, %38, %39 : vector<16x128xi1>, vector<16x128xf32>
    %43 = arith.mulf %35, %35 : vector<16x128xf32>
    %44 = arith.mulf %42, %42 : vector<16x128xf32>
    %45 = arith.addf %43, %44 : vector<16x128xf32>
    %46 = math.sqrt %45 : vector<16x128xf32>
    %47 = arith.addf %46, %46 : vector<16x128xf32>
    %48 = arith.mulf %47, %46 : vector<16x128xf32>
    %cst_40 = arith.constant 1.000000e+00 : f32
    %49 = vector.broadcast %cst_40 : f32 to vector<16x128xf32>
    %50 = arith.subf %48, %49 : vector<16x128xf32>
    %51 = arith.mulf %47, %50 : vector<16x128xf32>
    %52 = arith.subf %51, %46 : vector<16x128xf32>
    %53 = arith.addf %28, %28 : vector<16x128xf32>
    %c3 = arith.constant 3 : index
    %54 = memref.load %arg2[%c3] : memref<48xf32, #tpu.memory_space<smem>>
    %c3_41 = arith.constant 3 : index
    %55 = memref.load %arg3[%c3_41] : memref<48xf32, #tpu.memory_space<smem>>
    %56 = vector.broadcast %54 : f32 to vector<16x128xf32>
    %57 = arith.mulf %56, %52 : vector<16x128xf32>
    %58 = vector.broadcast %55 : f32 to vector<16x128xf32>
    %59 = arith.mulf %58, %52 : vector<16x128xf32>
    %c2 = arith.constant 2 : index
    %60 = memref.load %arg2[%c2] : memref<48xf32, #tpu.memory_space<smem>>
    %c2_42 = arith.constant 2 : index
    %61 = memref.load %arg3[%c2_42] : memref<48xf32, #tpu.memory_space<smem>>
    %62 = vector.broadcast %60 : f32 to vector<16x128xf32>
    %63 = arith.mulf %62, %50 : vector<16x128xf32>
    %64 = arith.addf %57, %63 : vector<16x128xf32>
    %65 = vector.broadcast %61 : f32 to vector<16x128xf32>
    %66 = arith.mulf %65, %50 : vector<16x128xf32>
    %67 = arith.addf %59, %66 : vector<16x128xf32>
    %c1 = arith.constant 1 : index
    %68 = memref.load %arg2[%c1] : memref<48xf32, #tpu.memory_space<smem>>
    %c1_43 = arith.constant 1 : index
    %69 = memref.load %arg3[%c1_43] : memref<48xf32, #tpu.memory_space<smem>>
    %70 = vector.broadcast %68 : f32 to vector<16x128xf32>
    %71 = arith.mulf %70, %46 : vector<16x128xf32>
    %72 = arith.addf %64, %71 : vector<16x128xf32>
    %73 = vector.broadcast %69 : f32 to vector<16x128xf32>
    %74 = arith.mulf %73, %46 : vector<16x128xf32>
    %75 = arith.addf %67, %74 : vector<16x128xf32>
    %c0_44 = arith.constant 0 : index
    %76 = memref.load %arg2[%c0_44] : memref<48xf32, #tpu.memory_space<smem>>
    %c0_45 = arith.constant 0 : index
    %77 = memref.load %arg3[%c0_45] : memref<48xf32, #tpu.memory_space<smem>>
    %78 = vector.broadcast %76 : f32 to vector<16x128xf32>
    %79 = arith.addf %72, %78 : vector<16x128xf32>
    %80 = vector.broadcast %77 : f32 to vector<16x128xf32>
    %81 = arith.addf %75, %80 : vector<16x128xf32>
    %c7 = arith.constant 7 : index
    %82 = memref.load %arg2[%c7] : memref<48xf32, #tpu.memory_space<smem>>
    %c7_46 = arith.constant 7 : index
    %83 = memref.load %arg3[%c7_46] : memref<48xf32, #tpu.memory_space<smem>>
    %84 = vector.broadcast %82 : f32 to vector<16x128xf32>
    %85 = arith.mulf %84, %52 : vector<16x128xf32>
    %86 = vector.broadcast %83 : f32 to vector<16x128xf32>
    %87 = arith.mulf %86, %52 : vector<16x128xf32>
    %c6 = arith.constant 6 : index
    %88 = memref.load %arg2[%c6] : memref<48xf32, #tpu.memory_space<smem>>
    %c6_47 = arith.constant 6 : index
    %89 = memref.load %arg3[%c6_47] : memref<48xf32, #tpu.memory_space<smem>>
    %90 = vector.broadcast %88 : f32 to vector<16x128xf32>
    %91 = arith.mulf %90, %50 : vector<16x128xf32>
    %92 = arith.addf %85, %91 : vector<16x128xf32>
    %93 = vector.broadcast %89 : f32 to vector<16x128xf32>
    %94 = arith.mulf %93, %50 : vector<16x128xf32>
    %95 = arith.addf %87, %94 : vector<16x128xf32>
    %c5 = arith.constant 5 : index
    %96 = memref.load %arg2[%c5] : memref<48xf32, #tpu.memory_space<smem>>
    %c5_48 = arith.constant 5 : index
    %97 = memref.load %arg3[%c5_48] : memref<48xf32, #tpu.memory_space<smem>>
    %98 = vector.broadcast %96 : f32 to vector<16x128xf32>
    %99 = arith.mulf %98, %46 : vector<16x128xf32>
    %100 = arith.addf %92, %99 : vector<16x128xf32>
    %101 = vector.broadcast %97 : f32 to vector<16x128xf32>
    %102 = arith.mulf %101, %46 : vector<16x128xf32>
    %103 = arith.addf %95, %102 : vector<16x128xf32>
    %c4 = arith.constant 4 : index
    %104 = memref.load %arg2[%c4] : memref<48xf32, #tpu.memory_space<smem>>
    %c4_49 = arith.constant 4 : index
    %105 = memref.load %arg3[%c4_49] : memref<48xf32, #tpu.memory_space<smem>>
    %106 = vector.broadcast %104 : f32 to vector<16x128xf32>
    %107 = arith.addf %100, %106 : vector<16x128xf32>
    %108 = vector.broadcast %105 : f32 to vector<16x128xf32>
    %109 = arith.addf %103, %108 : vector<16x128xf32>
    %110 = arith.mulf %28, %107 : vector<16x128xf32>
    %111 = arith.addf %79, %110 : vector<16x128xf32>
    %112 = arith.mulf %28, %109 : vector<16x128xf32>
    %113 = arith.addf %81, %112 : vector<16x128xf32>
    %114 = arith.mulf %53, %28 : vector<16x128xf32>
    %cst_50 = arith.constant 1.000000e+00 : f32
    %115 = vector.broadcast %cst_50 : f32 to vector<16x128xf32>
    %116 = arith.subf %114, %115 : vector<16x128xf32>
    %c11 = arith.constant 11 : index
    %117 = memref.load %arg2[%c11] : memref<48xf32, #tpu.memory_space<smem>>
    %c11_51 = arith.constant 11 : index
    %118 = memref.load %arg3[%c11_51] : memref<48xf32, #tpu.memory_space<smem>>
    %119 = vector.broadcast %117 : f32 to vector<16x128xf32>
    %120 = arith.mulf %119, %52 : vector<16x128xf32>
    %121 = vector.broadcast %118 : f32 to vector<16x128xf32>
    %122 = arith.mulf %121, %52 : vector<16x128xf32>
    %c10 = arith.constant 10 : index
    %123 = memref.load %arg2[%c10] : memref<48xf32, #tpu.memory_space<smem>>
    %c10_52 = arith.constant 10 : index
    %124 = memref.load %arg3[%c10_52] : memref<48xf32, #tpu.memory_space<smem>>
    %125 = vector.broadcast %123 : f32 to vector<16x128xf32>
    %126 = arith.mulf %125, %50 : vector<16x128xf32>
    %127 = arith.addf %120, %126 : vector<16x128xf32>
    %128 = vector.broadcast %124 : f32 to vector<16x128xf32>
    %129 = arith.mulf %128, %50 : vector<16x128xf32>
    %130 = arith.addf %122, %129 : vector<16x128xf32>
    %c9 = arith.constant 9 : index
    %131 = memref.load %arg2[%c9] : memref<48xf32, #tpu.memory_space<smem>>
    %c9_53 = arith.constant 9 : index
    %132 = memref.load %arg3[%c9_53] : memref<48xf32, #tpu.memory_space<smem>>
    %133 = vector.broadcast %131 : f32 to vector<16x128xf32>
    %134 = arith.mulf %133, %46 : vector<16x128xf32>
    %135 = arith.addf %127, %134 : vector<16x128xf32>
    %136 = vector.broadcast %132 : f32 to vector<16x128xf32>
    %137 = arith.mulf %136, %46 : vector<16x128xf32>
    %138 = arith.addf %130, %137 : vector<16x128xf32>
    %c8 = arith.constant 8 : index
    %139 = memref.load %arg2[%c8] : memref<48xf32, #tpu.memory_space<smem>>
    %c8_54 = arith.constant 8 : index
    %140 = memref.load %arg3[%c8_54] : memref<48xf32, #tpu.memory_space<smem>>
    %141 = vector.broadcast %139 : f32 to vector<16x128xf32>
    %142 = arith.addf %135, %141 : vector<16x128xf32>
    %143 = vector.broadcast %140 : f32 to vector<16x128xf32>
    %144 = arith.addf %138, %143 : vector<16x128xf32>
    %145 = arith.mulf %116, %142 : vector<16x128xf32>
    %146 = arith.addf %111, %145 : vector<16x128xf32>
    %147 = arith.mulf %116, %144 : vector<16x128xf32>
    %148 = arith.addf %113, %147 : vector<16x128xf32>
    %149 = arith.mulf %53, %116 : vector<16x128xf32>
    %150 = arith.subf %149, %28 : vector<16x128xf32>
    %c15_55 = arith.constant 15 : index
    %151 = memref.load %arg2[%c15_55] : memref<48xf32, #tpu.memory_space<smem>>
    %c15_56 = arith.constant 15 : index
    %152 = memref.load %arg3[%c15_56] : memref<48xf32, #tpu.memory_space<smem>>
    %153 = vector.broadcast %151 : f32 to vector<16x128xf32>
    %154 = arith.mulf %153, %52 : vector<16x128xf32>
    %155 = vector.broadcast %152 : f32 to vector<16x128xf32>
    %156 = arith.mulf %155, %52 : vector<16x128xf32>
    %c14 = arith.constant 14 : index
    %157 = memref.load %arg2[%c14] : memref<48xf32, #tpu.memory_space<smem>>
    %c14_57 = arith.constant 14 : index
    %158 = memref.load %arg3[%c14_57] : memref<48xf32, #tpu.memory_space<smem>>
    %159 = vector.broadcast %157 : f32 to vector<16x128xf32>
    %160 = arith.mulf %159, %50 : vector<16x128xf32>
    %161 = arith.addf %154, %160 : vector<16x128xf32>
    %162 = vector.broadcast %158 : f32 to vector<16x128xf32>
    %163 = arith.mulf %162, %50 : vector<16x128xf32>
    %164 = arith.addf %156, %163 : vector<16x128xf32>
    %c13 = arith.constant 13 : index
    %165 = memref.load %arg2[%c13] : memref<48xf32, #tpu.memory_space<smem>>
    %c13_58 = arith.constant 13 : index
    %166 = memref.load %arg3[%c13_58] : memref<48xf32, #tpu.memory_space<smem>>
    %167 = vector.broadcast %165 : f32 to vector<16x128xf32>
    %168 = arith.mulf %167, %46 : vector<16x128xf32>
    %169 = arith.addf %161, %168 : vector<16x128xf32>
    %170 = vector.broadcast %166 : f32 to vector<16x128xf32>
    %171 = arith.mulf %170, %46 : vector<16x128xf32>
    %172 = arith.addf %164, %171 : vector<16x128xf32>
    %c12 = arith.constant 12 : index
    %173 = memref.load %arg2[%c12] : memref<48xf32, #tpu.memory_space<smem>>
    %c12_59 = arith.constant 12 : index
    %174 = memref.load %arg3[%c12_59] : memref<48xf32, #tpu.memory_space<smem>>
    %175 = vector.broadcast %173 : f32 to vector<16x128xf32>
    %176 = arith.addf %169, %175 : vector<16x128xf32>
    %177 = vector.broadcast %174 : f32 to vector<16x128xf32>
    %178 = arith.addf %172, %177 : vector<16x128xf32>
    %179 = arith.mulf %150, %176 : vector<16x128xf32>
    %180 = arith.addf %146, %179 : vector<16x128xf32>
    %181 = arith.mulf %150, %178 : vector<16x128xf32>
    %182 = arith.addf %148, %181 : vector<16x128xf32>
    %c16_60 = arith.constant 16 : index
    %c0_61 = arith.constant 0 : index
    %183 = vector.load %arg10[%c16_60, %c0_61] : memref<32x128xf32, #tpu.memory_space<vmem>>, vector<16x128xf32>
    %c16_62 = arith.constant 16 : index
    %c0_63 = arith.constant 0 : index
    %184 = vector.load %arg11[%c16_62, %c0_63] : memref<32x128xf32, #tpu.memory_space<vmem>>, vector<16x128xf32>
    %185 = arith.mulf %183, %180 : vector<16x128xf32>
    %186 = arith.mulf %184, %182 : vector<16x128xf32>
    %187 = arith.subf %185, %186 : vector<16x128xf32>
    %188 = arith.addf %9, %187 : vector<16x128xf32>
    %189 = arith.mulf %183, %182 : vector<16x128xf32>
    %190 = arith.mulf %184, %180 : vector<16x128xf32>
    %191 = arith.addf %189, %190 : vector<16x128xf32>
    %192 = arith.addf %10, %191 : vector<16x128xf32>
    %193 = arith.mulf %183, %183 : vector<16x128xf32>
    %194 = arith.mulf %184, %184 : vector<16x128xf32>
    %195 = arith.addf %193, %194 : vector<16x128xf32>
    %196 = math.sqrt %195 : vector<16x128xf32>
    %c16_64 = arith.constant 16 : index
    %c0_65 = arith.constant 0 : index
    %197 = vector.load %arg10[%c16_64, %c0_65] : memref<32x128xf32, #tpu.memory_space<vmem>>, vector<16x128xf32>
    %c15_66 = arith.constant 15 : index
    %c0_67 = arith.constant 0 : index
    %198 = vector.load %arg10[%c15_66, %c0_67] : memref<32x128xf32, #tpu.memory_space<vmem>>, vector<16x128xf32>
    %c3_i32 = arith.constant 3 : i32
    %199 = tpu.dynamic_rotate %197 by %c3_i32 dim 1 : vector<16x128xf32>, i32 -> vector<16x128xf32>
    %c3_i32_68 = arith.constant 3 : i32
    %200 = tpu.dynamic_rotate %198 by %c3_i32_68 dim 1 : vector<16x128xf32>, i32 -> vector<16x128xf32>
    %c3_i32_69 = arith.constant 3 : i32
    %201 = vector.broadcast %c3_i32_69 : i32 to vector<16x128xi32>
    %202 = arith.cmpi sge, %8, %201 : vector<16x128xi32>
    %203 = arith.select %202, %199, %200 : vector<16x128xi1>, vector<16x128xf32>
    %c16_70 = arith.constant 16 : index
    %c0_71 = arith.constant 0 : index
    %204 = vector.load %arg11[%c16_70, %c0_71] : memref<32x128xf32, #tpu.memory_space<vmem>>, vector<16x128xf32>
    %c15_72 = arith.constant 15 : index
    %c0_73 = arith.constant 0 : index
    %205 = vector.load %arg11[%c15_72, %c0_73] : memref<32x128xf32, #tpu.memory_space<vmem>>, vector<16x128xf32>
    %c3_i32_74 = arith.constant 3 : i32
    %206 = tpu.dynamic_rotate %204 by %c3_i32_74 dim 1 : vector<16x128xf32>, i32 -> vector<16x128xf32>
    %c3_i32_75 = arith.constant 3 : i32
    %207 = tpu.dynamic_rotate %205 by %c3_i32_75 dim 1 : vector<16x128xf32>, i32 -> vector<16x128xf32>
    %c3_i32_76 = arith.constant 3 : i32
    %208 = vector.broadcast %c3_i32_76 : i32 to vector<16x128xi32>
    %209 = arith.cmpi sge, %8, %208 : vector<16x128xi32>
    %210 = arith.select %209, %206, %207 : vector<16x128xi1>, vector<16x128xf32>
    %211 = arith.mulf %203, %203 : vector<16x128xf32>
    %212 = arith.mulf %210, %210 : vector<16x128xf32>
    %213 = arith.addf %211, %212 : vector<16x128xf32>
    %214 = math.sqrt %213 : vector<16x128xf32>
    %215 = arith.addf %214, %214 : vector<16x128xf32>
    %216 = arith.mulf %215, %214 : vector<16x128xf32>
    %cst_77 = arith.constant 1.000000e+00 : f32
    %217 = vector.broadcast %cst_77 : f32 to vector<16x128xf32>
    %218 = arith.subf %216, %217 : vector<16x128xf32>
    %219 = arith.mulf %215, %218 : vector<16x128xf32>
    %220 = arith.subf %219, %214 : vector<16x128xf32>
    %221 = arith.addf %196, %196 : vector<16x128xf32>
    %c19 = arith.constant 19 : index
    %222 = memref.load %arg2[%c19] : memref<48xf32, #tpu.memory_space<smem>>
    %c19_78 = arith.constant 19 : index
    %223 = memref.load %arg3[%c19_78] : memref<48xf32, #tpu.memory_space<smem>>
    %224 = vector.broadcast %222 : f32 to vector<16x128xf32>
    %225 = arith.mulf %224, %220 : vector<16x128xf32>
    %226 = vector.broadcast %223 : f32 to vector<16x128xf32>
    %227 = arith.mulf %226, %220 : vector<16x128xf32>
    %c18 = arith.constant 18 : index
    %228 = memref.load %arg2[%c18] : memref<48xf32, #tpu.memory_space<smem>>
    %c18_79 = arith.constant 18 : index
    %229 = memref.load %arg3[%c18_79] : memref<48xf32, #tpu.memory_space<smem>>
    %230 = vector.broadcast %228 : f32 to vector<16x128xf32>
    %231 = arith.mulf %230, %218 : vector<16x128xf32>
    %232 = arith.addf %225, %231 : vector<16x128xf32>
    %233 = vector.broadcast %229 : f32 to vector<16x128xf32>
    %234 = arith.mulf %233, %218 : vector<16x128xf32>
    %235 = arith.addf %227, %234 : vector<16x128xf32>
    %c17 = arith.constant 17 : index
    %236 = memref.load %arg2[%c17] : memref<48xf32, #tpu.memory_space<smem>>
    %c17_80 = arith.constant 17 : index
    %237 = memref.load %arg3[%c17_80] : memref<48xf32, #tpu.memory_space<smem>>
    %238 = vector.broadcast %236 : f32 to vector<16x128xf32>
    %239 = arith.mulf %238, %214 : vector<16x128xf32>
    %240 = arith.addf %232, %239 : vector<16x128xf32>
    %241 = vector.broadcast %237 : f32 to vector<16x128xf32>
    %242 = arith.mulf %241, %214 : vector<16x128xf32>
    %243 = arith.addf %235, %242 : vector<16x128xf32>
    %c16_81 = arith.constant 16 : index
    %244 = memref.load %arg2[%c16_81] : memref<48xf32, #tpu.memory_space<smem>>
    %c16_82 = arith.constant 16 : index
    %245 = memref.load %arg3[%c16_82] : memref<48xf32, #tpu.memory_space<smem>>
    %246 = vector.broadcast %244 : f32 to vector<16x128xf32>
    %247 = arith.addf %240, %246 : vector<16x128xf32>
    %248 = vector.broadcast %245 : f32 to vector<16x128xf32>
    %249 = arith.addf %243, %248 : vector<16x128xf32>
    %c23 = arith.constant 23 : index
    %250 = memref.load %arg2[%c23] : memref<48xf32, #tpu.memory_space<smem>>
    %c23_83 = arith.constant 23 : index
    %251 = memref.load %arg3[%c23_83] : memref<48xf32, #tpu.memory_space<smem>>
    %252 = vector.broadcast %250 : f32 to vector<16x128xf32>
    %253 = arith.mulf %252, %220 : vector<16x128xf32>
    %254 = vector.broadcast %251 : f32 to vector<16x128xf32>
    %255 = arith.mulf %254, %220 : vector<16x128xf32>
    %c22 = arith.constant 22 : index
    %256 = memref.load %arg2[%c22] : memref<48xf32, #tpu.memory_space<smem>>
    %c22_84 = arith.constant 22 : index
    %257 = memref.load %arg3[%c22_84] : memref<48xf32, #tpu.memory_space<smem>>
    %258 = vector.broadcast %256 : f32 to vector<16x128xf32>
    %259 = arith.mulf %258, %218 : vector<16x128xf32>
    %260 = arith.addf %253, %259 : vector<16x128xf32>
    %261 = vector.broadcast %257 : f32 to vector<16x128xf32>
    %262 = arith.mulf %261, %218 : vector<16x128xf32>
    %263 = arith.addf %255, %262 : vector<16x128xf32>
    %c21 = arith.constant 21 : index
    %264 = memref.load %arg2[%c21] : memref<48xf32, #tpu.memory_space<smem>>
    %c21_85 = arith.constant 21 : index
    %265 = memref.load %arg3[%c21_85] : memref<48xf32, #tpu.memory_space<smem>>
    %266 = vector.broadcast %264 : f32 to vector<16x128xf32>
    %267 = arith.mulf %266, %214 : vector<16x128xf32>
    %268 = arith.addf %260, %267 : vector<16x128xf32>
    %269 = vector.broadcast %265 : f32 to vector<16x128xf32>
    %270 = arith.mulf %269, %214 : vector<16x128xf32>
    %271 = arith.addf %263, %270 : vector<16x128xf32>
    %c20 = arith.constant 20 : index
    %272 = memref.load %arg2[%c20] : memref<48xf32, #tpu.memory_space<smem>>
    %c20_86 = arith.constant 20 : index
    %273 = memref.load %arg3[%c20_86] : memref<48xf32, #tpu.memory_space<smem>>
    %274 = vector.broadcast %272 : f32 to vector<16x128xf32>
    %275 = arith.addf %268, %274 : vector<16x128xf32>
    %276 = vector.broadcast %273 : f32 to vector<16x128xf32>
    %277 = arith.addf %271, %276 : vector<16x128xf32>
    %278 = arith.mulf %196, %275 : vector<16x128xf32>
    %279 = arith.addf %247, %278 : vector<16x128xf32>
    %280 = arith.mulf %196, %277 : vector<16x128xf32>
    %281 = arith.addf %249, %280 : vector<16x128xf32>
    %282 = arith.mulf %221, %196 : vector<16x128xf32>
    %cst_87 = arith.constant 1.000000e+00 : f32
    %283 = vector.broadcast %cst_87 : f32 to vector<16x128xf32>
    %284 = arith.subf %282, %283 : vector<16x128xf32>
    %c27 = arith.constant 27 : index
    %285 = memref.load %arg2[%c27] : memref<48xf32, #tpu.memory_space<smem>>
    %c27_88 = arith.constant 27 : index
    %286 = memref.load %arg3[%c27_88] : memref<48xf32, #tpu.memory_space<smem>>
    %287 = vector.broadcast %285 : f32 to vector<16x128xf32>
    %288 = arith.mulf %287, %220 : vector<16x128xf32>
    %289 = vector.broadcast %286 : f32 to vector<16x128xf32>
    %290 = arith.mulf %289, %220 : vector<16x128xf32>
    %c26 = arith.constant 26 : index
    %291 = memref.load %arg2[%c26] : memref<48xf32, #tpu.memory_space<smem>>
    %c26_89 = arith.constant 26 : index
    %292 = memref.load %arg3[%c26_89] : memref<48xf32, #tpu.memory_space<smem>>
    %293 = vector.broadcast %291 : f32 to vector<16x128xf32>
    %294 = arith.mulf %293, %218 : vector<16x128xf32>
    %295 = arith.addf %288, %294 : vector<16x128xf32>
    %296 = vector.broadcast %292 : f32 to vector<16x128xf32>
    %297 = arith.mulf %296, %218 : vector<16x128xf32>
    %298 = arith.addf %290, %297 : vector<16x128xf32>
    %c25 = arith.constant 25 : index
    %299 = memref.load %arg2[%c25] : memref<48xf32, #tpu.memory_space<smem>>
    %c25_90 = arith.constant 25 : index
    %300 = memref.load %arg3[%c25_90] : memref<48xf32, #tpu.memory_space<smem>>
    %301 = vector.broadcast %299 : f32 to vector<16x128xf32>
    %302 = arith.mulf %301, %214 : vector<16x128xf32>
    %303 = arith.addf %295, %302 : vector<16x128xf32>
    %304 = vector.broadcast %300 : f32 to vector<16x128xf32>
    %305 = arith.mulf %304, %214 : vector<16x128xf32>
    %306 = arith.addf %298, %305 : vector<16x128xf32>
    %c24 = arith.constant 24 : index
    %307 = memref.load %arg2[%c24] : memref<48xf32, #tpu.memory_space<smem>>
    %c24_91 = arith.constant 24 : index
    %308 = memref.load %arg3[%c24_91] : memref<48xf32, #tpu.memory_space<smem>>
    %309 = vector.broadcast %307 : f32 to vector<16x128xf32>
    %310 = arith.addf %303, %309 : vector<16x128xf32>
    %311 = vector.broadcast %308 : f32 to vector<16x128xf32>
    %312 = arith.addf %306, %311 : vector<16x128xf32>
    %313 = arith.mulf %284, %310 : vector<16x128xf32>
    %314 = arith.addf %279, %313 : vector<16x128xf32>
    %315 = arith.mulf %284, %312 : vector<16x128xf32>
    %316 = arith.addf %281, %315 : vector<16x128xf32>
    %317 = arith.mulf %221, %284 : vector<16x128xf32>
    %318 = arith.subf %317, %196 : vector<16x128xf32>
    %c31 = arith.constant 31 : index
    %319 = memref.load %arg2[%c31] : memref<48xf32, #tpu.memory_space<smem>>
    %c31_92 = arith.constant 31 : index
    %320 = memref.load %arg3[%c31_92] : memref<48xf32, #tpu.memory_space<smem>>
    %321 = vector.broadcast %319 : f32 to vector<16x128xf32>
    %322 = arith.mulf %321, %220 : vector<16x128xf32>
    %323 = vector.broadcast %320 : f32 to vector<16x128xf32>
    %324 = arith.mulf %323, %220 : vector<16x128xf32>
    %c30 = arith.constant 30 : index
    %325 = memref.load %arg2[%c30] : memref<48xf32, #tpu.memory_space<smem>>
    %c30_93 = arith.constant 30 : index
    %326 = memref.load %arg3[%c30_93] : memref<48xf32, #tpu.memory_space<smem>>
    %327 = vector.broadcast %325 : f32 to vector<16x128xf32>
    %328 = arith.mulf %327, %218 : vector<16x128xf32>
    %329 = arith.addf %322, %328 : vector<16x128xf32>
    %330 = vector.broadcast %326 : f32 to vector<16x128xf32>
    %331 = arith.mulf %330, %218 : vector<16x128xf32>
    %332 = arith.addf %324, %331 : vector<16x128xf32>
    %c29 = arith.constant 29 : index
    %333 = memref.load %arg2[%c29] : memref<48xf32, #tpu.memory_space<smem>>
    %c29_94 = arith.constant 29 : index
    %334 = memref.load %arg3[%c29_94] : memref<48xf32, #tpu.memory_space<smem>>
    %335 = vector.broadcast %333 : f32 to vector<16x128xf32>
    %336 = arith.mulf %335, %214 : vector<16x128xf32>
    %337 = arith.addf %329, %336 : vector<16x128xf32>
    %338 = vector.broadcast %334 : f32 to vector<16x128xf32>
    %339 = arith.mulf %338, %214 : vector<16x128xf32>
    %340 = arith.addf %332, %339 : vector<16x128xf32>
    %c28 = arith.constant 28 : index
    %341 = memref.load %arg2[%c28] : memref<48xf32, #tpu.memory_space<smem>>
    %c28_95 = arith.constant 28 : index
    %342 = memref.load %arg3[%c28_95] : memref<48xf32, #tpu.memory_space<smem>>
    %343 = vector.broadcast %341 : f32 to vector<16x128xf32>
    %344 = arith.addf %337, %343 : vector<16x128xf32>
    %345 = vector.broadcast %342 : f32 to vector<16x128xf32>
    %346 = arith.addf %340, %345 : vector<16x128xf32>
    %347 = arith.mulf %318, %344 : vector<16x128xf32>
    %348 = arith.addf %314, %347 : vector<16x128xf32>
    %349 = arith.mulf %318, %346 : vector<16x128xf32>
    %350 = arith.addf %316, %349 : vector<16x128xf32>
    %351 = arith.mulf %17, %348 : vector<16x128xf32>
    %352 = arith.mulf %24, %350 : vector<16x128xf32>
    %353 = arith.subf %351, %352 : vector<16x128xf32>
    %354 = arith.addf %188, %353 : vector<16x128xf32>
    %355 = arith.mulf %17, %350 : vector<16x128xf32>
    %356 = arith.mulf %24, %348 : vector<16x128xf32>
    %357 = arith.addf %355, %356 : vector<16x128xf32>
    %358 = arith.addf %192, %357 : vector<16x128xf32>
    %359 = arith.addf %28, %28 : vector<16x128xf32>
    %360 = arith.mulf %359, %28 : vector<16x128xf32>
    %cst_96 = arith.constant 1.000000e+00 : f32
    %361 = vector.broadcast %cst_96 : f32 to vector<16x128xf32>
    %362 = arith.subf %360, %361 : vector<16x128xf32>
    %363 = arith.mulf %359, %362 : vector<16x128xf32>
    %364 = arith.subf %363, %28 : vector<16x128xf32>
    %365 = arith.addf %46, %46 : vector<16x128xf32>
    %c35 = arith.constant 35 : index
    %366 = memref.load %arg2[%c35] : memref<48xf32, #tpu.memory_space<smem>>
    %c35_97 = arith.constant 35 : index
    %367 = memref.load %arg3[%c35_97] : memref<48xf32, #tpu.memory_space<smem>>
    %368 = vector.broadcast %366 : f32 to vector<16x128xf32>
    %369 = arith.mulf %368, %364 : vector<16x128xf32>
    %370 = vector.broadcast %367 : f32 to vector<16x128xf32>
    %371 = arith.mulf %370, %364 : vector<16x128xf32>
    %c34 = arith.constant 34 : index
    %372 = memref.load %arg2[%c34] : memref<48xf32, #tpu.memory_space<smem>>
    %c34_98 = arith.constant 34 : index
    %373 = memref.load %arg3[%c34_98] : memref<48xf32, #tpu.memory_space<smem>>
    %374 = vector.broadcast %372 : f32 to vector<16x128xf32>
    %375 = arith.mulf %374, %362 : vector<16x128xf32>
    %376 = arith.addf %369, %375 : vector<16x128xf32>
    %377 = vector.broadcast %373 : f32 to vector<16x128xf32>
    %378 = arith.mulf %377, %362 : vector<16x128xf32>
    %379 = arith.addf %371, %378 : vector<16x128xf32>
    %c33 = arith.constant 33 : index
    %380 = memref.load %arg2[%c33] : memref<48xf32, #tpu.memory_space<smem>>
    %c33_99 = arith.constant 33 : index
    %381 = memref.load %arg3[%c33_99] : memref<48xf32, #tpu.memory_space<smem>>
    %382 = vector.broadcast %380 : f32 to vector<16x128xf32>
    %383 = arith.mulf %382, %28 : vector<16x128xf32>
    %384 = arith.addf %376, %383 : vector<16x128xf32>
    %385 = vector.broadcast %381 : f32 to vector<16x128xf32>
    %386 = arith.mulf %385, %28 : vector<16x128xf32>
    %387 = arith.addf %379, %386 : vector<16x128xf32>
    %c32 = arith.constant 32 : index
    %388 = memref.load %arg2[%c32] : memref<48xf32, #tpu.memory_space<smem>>
    %c32_100 = arith.constant 32 : index
    %389 = memref.load %arg3[%c32_100] : memref<48xf32, #tpu.memory_space<smem>>
    %390 = vector.broadcast %388 : f32 to vector<16x128xf32>
    %391 = arith.addf %384, %390 : vector<16x128xf32>
    %392 = vector.broadcast %389 : f32 to vector<16x128xf32>
    %393 = arith.addf %387, %392 : vector<16x128xf32>
    %c39 = arith.constant 39 : index
    %394 = memref.load %arg2[%c39] : memref<48xf32, #tpu.memory_space<smem>>
    %c39_101 = arith.constant 39 : index
    %395 = memref.load %arg3[%c39_101] : memref<48xf32, #tpu.memory_space<smem>>
    %396 = vector.broadcast %394 : f32 to vector<16x128xf32>
    %397 = arith.mulf %396, %364 : vector<16x128xf32>
    %398 = vector.broadcast %395 : f32 to vector<16x128xf32>
    %399 = arith.mulf %398, %364 : vector<16x128xf32>
    %c38 = arith.constant 38 : index
    %400 = memref.load %arg2[%c38] : memref<48xf32, #tpu.memory_space<smem>>
    %c38_102 = arith.constant 38 : index
    %401 = memref.load %arg3[%c38_102] : memref<48xf32, #tpu.memory_space<smem>>
    %402 = vector.broadcast %400 : f32 to vector<16x128xf32>
    %403 = arith.mulf %402, %362 : vector<16x128xf32>
    %404 = arith.addf %397, %403 : vector<16x128xf32>
    %405 = vector.broadcast %401 : f32 to vector<16x128xf32>
    %406 = arith.mulf %405, %362 : vector<16x128xf32>
    %407 = arith.addf %399, %406 : vector<16x128xf32>
    %c37 = arith.constant 37 : index
    %408 = memref.load %arg2[%c37] : memref<48xf32, #tpu.memory_space<smem>>
    %c37_103 = arith.constant 37 : index
    %409 = memref.load %arg3[%c37_103] : memref<48xf32, #tpu.memory_space<smem>>
    %410 = vector.broadcast %408 : f32 to vector<16x128xf32>
    %411 = arith.mulf %410, %28 : vector<16x128xf32>
    %412 = arith.addf %404, %411 : vector<16x128xf32>
    %413 = vector.broadcast %409 : f32 to vector<16x128xf32>
    %414 = arith.mulf %413, %28 : vector<16x128xf32>
    %415 = arith.addf %407, %414 : vector<16x128xf32>
    %c36 = arith.constant 36 : index
    %416 = memref.load %arg2[%c36] : memref<48xf32, #tpu.memory_space<smem>>
    %c36_104 = arith.constant 36 : index
    %417 = memref.load %arg3[%c36_104] : memref<48xf32, #tpu.memory_space<smem>>
    %418 = vector.broadcast %416 : f32 to vector<16x128xf32>
    %419 = arith.addf %412, %418 : vector<16x128xf32>
    %420 = vector.broadcast %417 : f32 to vector<16x128xf32>
    %421 = arith.addf %415, %420 : vector<16x128xf32>
    %422 = arith.mulf %46, %419 : vector<16x128xf32>
    %423 = arith.addf %391, %422 : vector<16x128xf32>
    %424 = arith.mulf %46, %421 : vector<16x128xf32>
    %425 = arith.addf %393, %424 : vector<16x128xf32>
    %426 = arith.mulf %365, %46 : vector<16x128xf32>
    %cst_105 = arith.constant 1.000000e+00 : f32
    %427 = vector.broadcast %cst_105 : f32 to vector<16x128xf32>
    %428 = arith.subf %426, %427 : vector<16x128xf32>
    %c43 = arith.constant 43 : index
    %429 = memref.load %arg2[%c43] : memref<48xf32, #tpu.memory_space<smem>>
    %c43_106 = arith.constant 43 : index
    %430 = memref.load %arg3[%c43_106] : memref<48xf32, #tpu.memory_space<smem>>
    %431 = vector.broadcast %429 : f32 to vector<16x128xf32>
    %432 = arith.mulf %431, %364 : vector<16x128xf32>
    %433 = vector.broadcast %430 : f32 to vector<16x128xf32>
    %434 = arith.mulf %433, %364 : vector<16x128xf32>
    %c42 = arith.constant 42 : index
    %435 = memref.load %arg2[%c42] : memref<48xf32, #tpu.memory_space<smem>>
    %c42_107 = arith.constant 42 : index
    %436 = memref.load %arg3[%c42_107] : memref<48xf32, #tpu.memory_space<smem>>
    %437 = vector.broadcast %435 : f32 to vector<16x128xf32>
    %438 = arith.mulf %437, %362 : vector<16x128xf32>
    %439 = arith.addf %432, %438 : vector<16x128xf32>
    %440 = vector.broadcast %436 : f32 to vector<16x128xf32>
    %441 = arith.mulf %440, %362 : vector<16x128xf32>
    %442 = arith.addf %434, %441 : vector<16x128xf32>
    %c41 = arith.constant 41 : index
    %443 = memref.load %arg2[%c41] : memref<48xf32, #tpu.memory_space<smem>>
    %c41_108 = arith.constant 41 : index
    %444 = memref.load %arg3[%c41_108] : memref<48xf32, #tpu.memory_space<smem>>
    %445 = vector.broadcast %443 : f32 to vector<16x128xf32>
    %446 = arith.mulf %445, %28 : vector<16x128xf32>
    %447 = arith.addf %439, %446 : vector<16x128xf32>
    %448 = vector.broadcast %444 : f32 to vector<16x128xf32>
    %449 = arith.mulf %448, %28 : vector<16x128xf32>
    %450 = arith.addf %442, %449 : vector<16x128xf32>
    %c40 = arith.constant 40 : index
    %451 = memref.load %arg2[%c40] : memref<48xf32, #tpu.memory_space<smem>>
    %c40_109 = arith.constant 40 : index
    %452 = memref.load %arg3[%c40_109] : memref<48xf32, #tpu.memory_space<smem>>
    %453 = vector.broadcast %451 : f32 to vector<16x128xf32>
    %454 = arith.addf %447, %453 : vector<16x128xf32>
    %455 = vector.broadcast %452 : f32 to vector<16x128xf32>
    %456 = arith.addf %450, %455 : vector<16x128xf32>
    %457 = arith.mulf %428, %454 : vector<16x128xf32>
    %458 = arith.addf %423, %457 : vector<16x128xf32>
    %459 = arith.mulf %428, %456 : vector<16x128xf32>
    %460 = arith.addf %425, %459 : vector<16x128xf32>
    %461 = arith.mulf %365, %428 : vector<16x128xf32>
    %462 = arith.subf %461, %46 : vector<16x128xf32>
    %c47 = arith.constant 47 : index
    %463 = memref.load %arg2[%c47] : memref<48xf32, #tpu.memory_space<smem>>
    %c47_110 = arith.constant 47 : index
    %464 = memref.load %arg3[%c47_110] : memref<48xf32, #tpu.memory_space<smem>>
    %465 = vector.broadcast %463 : f32 to vector<16x128xf32>
    %466 = arith.mulf %465, %364 : vector<16x128xf32>
    %467 = vector.broadcast %464 : f32 to vector<16x128xf32>
    %468 = arith.mulf %467, %364 : vector<16x128xf32>
    %c46 = arith.constant 46 : index
    %469 = memref.load %arg2[%c46] : memref<48xf32, #tpu.memory_space<smem>>
    %c46_111 = arith.constant 46 : index
    %470 = memref.load %arg3[%c46_111] : memref<48xf32, #tpu.memory_space<smem>>
    %471 = vector.broadcast %469 : f32 to vector<16x128xf32>
    %472 = arith.mulf %471, %362 : vector<16x128xf32>
    %473 = arith.addf %466, %472 : vector<16x128xf32>
    %474 = vector.broadcast %470 : f32 to vector<16x128xf32>
    %475 = arith.mulf %474, %362 : vector<16x128xf32>
    %476 = arith.addf %468, %475 : vector<16x128xf32>
    %c45 = arith.constant 45 : index
    %477 = memref.load %arg2[%c45] : memref<48xf32, #tpu.memory_space<smem>>
    %c45_112 = arith.constant 45 : index
    %478 = memref.load %arg3[%c45_112] : memref<48xf32, #tpu.memory_space<smem>>
    %479 = vector.broadcast %477 : f32 to vector<16x128xf32>
    %480 = arith.mulf %479, %28 : vector<16x128xf32>
    %481 = arith.addf %473, %480 : vector<16x128xf32>
    %482 = vector.broadcast %478 : f32 to vector<16x128xf32>
    %483 = arith.mulf %482, %28 : vector<16x128xf32>
    %484 = arith.addf %476, %483 : vector<16x128xf32>
    %c44 = arith.constant 44 : index
    %485 = memref.load %arg2[%c44] : memref<48xf32, #tpu.memory_space<smem>>
    %c44_113 = arith.constant 44 : index
    %486 = memref.load %arg3[%c44_113] : memref<48xf32, #tpu.memory_space<smem>>
    %487 = vector.broadcast %485 : f32 to vector<16x128xf32>
    %488 = arith.addf %481, %487 : vector<16x128xf32>
    %489 = vector.broadcast %486 : f32 to vector<16x128xf32>
    %490 = arith.addf %484, %489 : vector<16x128xf32>
    %491 = arith.mulf %462, %488 : vector<16x128xf32>
    %492 = arith.addf %458, %491 : vector<16x128xf32>
    %493 = arith.mulf %462, %490 : vector<16x128xf32>
    %494 = arith.addf %460, %493 : vector<16x128xf32>
    %495 = arith.mulf %35, %492 : vector<16x128xf32>
    %496 = arith.mulf %42, %494 : vector<16x128xf32>
    %497 = arith.subf %495, %496 : vector<16x128xf32>
    %498 = arith.addf %354, %497 : vector<16x128xf32>
    %499 = arith.mulf %35, %494 : vector<16x128xf32>
    %500 = arith.mulf %42, %492 : vector<16x128xf32>
    %501 = arith.addf %499, %500 : vector<16x128xf32>
    %502 = arith.addf %358, %501 : vector<16x128xf32>
    %c0_114 = arith.constant 0 : index
    %c0_115 = arith.constant 0 : index
    %503 = vector.load %arg8[%c0_114, %c0_115] : memref<16x128xf32, #tpu.memory_space<vmem>>, vector<16x128xf32>
    tpu.vector_store %arg8[%c0_114, %c0_115], %498 {strides = array<i32>} : memref<16x128xf32, #tpu.memory_space<vmem>>, vector<16x128xf32>,
    %c0_116 = arith.constant 0 : index
    %c0_117 = arith.constant 0 : index
    %504 = vector.load %arg9[%c0_116, %c0_117] : memref<16x128xf32, #tpu.memory_space<vmem>>, vector<16x128xf32>
    tpu.vector_store %arg9[%c0_116, %c0_117], %502 {strides = array<i32>} : memref<16x128xf32, #tpu.memory_space<vmem>>, vector<16x128xf32>,
    return
  }
  func.func @transform_0(%arg0: i32, %arg1: i32) -> i32 {
    %c0_i32 = arith.constant 0 : i32
    %c0_i32_0 = arith.constant 0 : i32
    return %c0_i32 : i32
  }
  func.func @transform_1(%arg0: i32, %arg1: i32) -> i32 {
    %c0_i32 = arith.constant 0 : i32
    %c0_i32_0 = arith.constant 0 : i32
    return %c0_i32 : i32
  }
  func.func @transform_2(%arg0: i32, %arg1: i32) -> (i32, i32) {
    %c5_i32 = arith.constant 5 : i32
    %0 = arith.muli %arg0, %c5_i32 : i32
    %1 = arith.addi %0, %arg1 : i32
    %c0_i32 = arith.constant 0 : i32
    %c0_i32_0 = arith.constant 0 : i32
    return %1, %c0_i32 : i32, i32
  }
  func.func @transform_3(%arg0: i32, %arg1: i32) -> (i32, i32) {
    %c5_i32 = arith.constant 5 : i32
    %0 = arith.muli %arg0, %c5_i32 : i32
    %1 = arith.addi %0, %arg1 : i32
    %c1_i32 = arith.constant 1 : i32
    %2 = arith.addi %1, %c1_i32 : i32
    %c0_i32 = arith.constant 0 : i32
    %c0_i32_0 = arith.constant 0 : i32
    return %2, %c0_i32 : i32, i32
  }
  func.func @transform_4(%arg0: i32, %arg1: i32) -> (i32, i32) {
    %c5_i32 = arith.constant 5 : i32
    %0 = arith.muli %arg0, %c5_i32 : i32
    %1 = arith.addi %0, %arg1 : i32
    %c0_i32 = arith.constant 0 : i32
    %c0_i32_0 = arith.constant 0 : i32
    return %1, %c0_i32 : i32, i32
  }
  func.func @transform_5(%arg0: i32, %arg1: i32) -> (i32, i32) {
    %c5_i32 = arith.constant 5 : i32
    %0 = arith.muli %arg0, %c5_i32 : i32
    %1 = arith.addi %0, %arg1 : i32
    %c1_i32 = arith.constant 1 : i32
    %2 = arith.addi %1, %c1_i32 : i32
    %c0_i32 = arith.constant 0 : i32
    %c0_i32_0 = arith.constant 0 : i32
    return %2, %c0_i32 : i32, i32
  }
  func.func @transform_6(%arg0: i32, %arg1: i32) -> (i32, i32) {
    %c4_i32 = arith.constant 4 : i32
    %0 = arith.muli %arg0, %c4_i32 : i32
    %1 = arith.addi %0, %arg1 : i32
    %c0_i32 = arith.constant 0 : i32
    %c0_i32_0 = arith.constant 0 : i32
    return %1, %c0_i32 : i32, i32
  }
  func.func @transform_7(%arg0: i32, %arg1: i32) -> (i32, i32) {
    %c4_i32 = arith.constant 4 : i32
    %0 = arith.muli %arg0, %c4_i32 : i32
    %1 = arith.addi %0, %arg1 : i32
    %c0_i32 = arith.constant 0 : i32
    %c0_i32_0 = arith.constant 0 : i32
    return %1, %c0_i32 : i32, i32
  }
}

</mosaic_0001>

<llo_original>
// kernel: tpu_custom_call.1
$region0: #{tpu_custom_call.1}
  #allocation0 [shape = 'u32[]', space=smem, size = 0x4, offset = 0x4, fixed_abs, tag = 'smem constant byte address 0x4 - core index']
  #allocation1 [shape = 'u32[144,128]{1,0:T(1,128)}', space=vmem, size = 0x12000, scoped, tag = 'internal scratch']
  #allocation2 [shape = 'f32[32,128]{1,0:T(8,128)}', space=vmem, size = 0x4000, scoped, tag = 'scratch operand']
  #allocation3 [shape = 'f32[32,128]{1,0:T(8,128)}', space=vmem, size = 0x4000, scoped, tag = 'scratch operand']
  %s0 = inlined_call_operand.hbm [shape: f32[48], index: 0, kind: input, shape index: {}]
  %s1 = inlined_call_operand.vmem [shape: f32[48], index: 1, kind: input, shape index: {}]
  %s2 = inlined_call_operand.hbm [shape: f32[160,128], index: 2, kind: input, shape index: {}]
  %s3 = inlined_call_operand.hbm [shape: f32[160,128], index: 3, kind: input, shape index: {}]
  %s4 = inlined_call_operand.hbm [shape: f32[160,128], index: 4, kind: input, shape index: {}]
  %s5 = inlined_call_operand.hbm [shape: f32[160,128], index: 5, kind: input, shape index: {}]
  %s6 = inlined_call_operand.hbm [shape: f32[128,128], index: 6, kind: output, shape index: {0}]
  %s7 = inlined_call_operand.hbm [shape: f32[128,128], index: 7, kind: output, shape index: {1}]
  %8 = xla_tuple %s6, %s7
  %s9 = sld [smem:[#allocation0]]
  $region89: #{tpu_custom_call.1} parent=0
    _
  %s11 = ssub.s32 1, %s9
  %s12 = scalar_select 0, %s11, %s9
  $region1: #{tpu_custom_call.1} parent=0
    #allocation4 [shape = 'u8[512]{0}', space=smem, size = 0x200, scoped, tag = 'input window, operand 0, single buffered']
    #allocation5 [shape = 's32[2]{0}', space=sflag, size = 0x8, scoped, tag = 'scoped memory for tpu_custom_call.1']
    #allocation6 [shape = 's32[2]{0}', space=sflag, size = 0x8, scoped, tag = 'scoped memory for tpu_custom_call.1']
    #allocation7 [shape = 's32[2]{0}', space=sflag, size = 0x8, scoped, tag = 'scoped memory for tpu_custom_call.1']
    #allocation8 [shape = 's32[2]{0}', space=sflag, size = 0x8, scoped, tag = 'scoped memory for tpu_custom_call.1']
    #allocation9 [shape = 'u8[512]{0}', space=smem, size = 0x200, scoped, tag = 'input window, operand 1, single buffered']
    #allocation10 [shape = 'u8[16384]{0}', space=vmem, size = 0x4000, scoped, tag = 'input window, operand 2']
    #allocation11 [shape = 'u8[16384]{0}', space=vmem, size = 0x4000, scoped, tag = 'input window, operand 3']
    #allocation12 [shape = 's32[2]{0}', space=sflag, size = 0x8, scoped, tag = 'scoped memory for tpu_custom_call.1']
    #allocation13 [shape = 'u8[16384]{0}', space=vmem, size = 0x4000, scoped, tag = 'input window, operand 4']
    #allocation14 [shape = 'u8[16384]{0}', space=vmem, size = 0x4000, scoped, tag = 'input window, operand 5']
    #allocation15 [shape = 's32[2]{0}', space=sflag, size = 0x8, scoped, tag = 'scoped memory for tpu_custom_call.1']
    #allocation16 [shape = 'u8[16384]{0}', space=vmem, size = 0x4000, scoped, tag = 'output window, operand 0']
    #allocation17 [shape = 'u8[16384]{0}', space=vmem, size = 0x4000, scoped, tag = 'output window, operand 1']
    #allocation18 [shape = 's32[2]{0}', space=sflag, size = 0x8, scoped, tag = 'scoped memory for tpu_custom_call.1']
    %13 = vsyncpa [#allocation7], 0
    %14 = vsyncpa [#allocation8], 0
    %15 = vsyncpa [#allocation5], 0
    %s16 = scalar_lea.sflag [#allocation5], 1
    %17 = vsyncpa %s16, 0
    %18 = vsyncpa [#allocation12], 0
    %s19 = scalar_lea.sflag [#allocation12], 1
    %20 = vsyncpa %s19, 0
    %21 = vsyncpa [#allocation15], 0
    %s22 = scalar_lea.sflag [#allocation15], 1
    %23 = vsyncpa %s22, 0
    %24 = vsyncpa [#allocation6], 0
    %s25 = scalar_lea.sflag [#allocation6], 1
    %26 = vsyncpa %s25, 0
    %27 = vsyncpa [#allocation18], 0
    %s28 = scalar_lea.sflag [#allocation18], 1
    %29 = vsyncpa %s28, 0
    loop: start=0, step=1, limit=10
    $region2: #{tpu_custom_call.1} parent=1 // loop_pre_header
      _
    $region3: #{tpu_custom_call.1} parent=1 // loop_header
      %s31 = sphi 0, %s35
      %p32 = scmp.ge.s32.totalorder %s31, 10
      %s38 = sphi 0, %s50
      %s39 = sphi 0, %s46
      %s40 = sphi 0, %s38
      %s41 = sphi 0, %s39
      %s42 = sphi 0, %s40
      %s43 = sphi 0, %s41
      %s51 = sphi 0, %s51
      %s53 = sphi 0, %s51
      %s54 = sphi 0, %s53
      %s68 = sphi 0, %s54
      %s72 = sphi 0, %s72
      %s74 = sphi 0, %s72
      %s75 = sphi 0, %s74
      %s89 = sphi 0, %s75
      %s99 = sphi 0, %s101
      %s102 = sphi 0, %s99
      %s103 = sphi 0, %s102
      %s119 = sphi 0, %s103
      %s131 = sphi 0, %s133
      %s134 = sphi 0, %s131
      %s135 = sphi 0, %s134
      %s151 = sphi 0, %s135
      %s161 = sphi 0, %s163
      %s164 = sphi 0, %s161
      %s165 = sphi 0, %s164
      %s181 = sphi 0, %s165
      %s193 = sphi 0, %s195
      %s196 = sphi 0, %s193
      %s197 = sphi 0, %s196
      %s213 = sphi 0, %s197
      %s223 = sphi 0, %s225
      %s226 = sphi 0, %s223
      %s227 = sphi 0, %s226
      %s243 = sphi 0, %s227
      %s253 = sphi 0, %s255
      %s256 = sphi 0, %s253
      %s257 = sphi 0, %s256
      %s273 = sphi 0, %s257
    $region4: #{tpu_custom_call.1} parent=1 // loop_header_branch
      %34 = sbr.rel (%p32) target = $region8
    $region5: #{tpu_custom_call.1} parent=1 // loop_body
      %s36 = ssub.s32 %s31, 1
      %s37 = ssub.s32 %s31, 2
      %s44 = sadd.s32 1, %s39
      %p45 = scmp.ge.s32.totalorder %s44, 4
      %s46 = scalar_select %p45, 0, %s44
      %s47 = sadd.s32 1, %s38
      %s48 = scalar_select %p45, %s47, %s38
      %p49 = scmp.ge.s32.totalorder %s48, 2
      %s50 = scalar_select %p49, 0, %s48
      %s52 = sadd.s32 %s51, 1
      %p55 = scmp.eq.s32.totalorder %s31, 7
      %p56 = scmp.ne.s32.totalorder %s51, %s53
      %p57 = scmp.eq.s32.totalorder %s31, 0
      %p58 = por %p56, %p57
      %p59 = scmp.ne.s32.totalorder %s51, %s53
      %p60 = scmp.eq.s32.totalorder %s36, 7
      %p61 = por %p59, %p60
      %p62 = scmp.ne.s32.totalorder %s53, %s54
      %p63 = scmp.eq.s32.totalorder %s36, 0
      %p64 = por %p62, %p63
      %p65 = scmp.ne.s32.totalorder %s53, %s54
      %p66 = scmp.eq.s32.totalorder %s37, 7
      %p67 = por %p65, %p66
      %p69 = scmp.ne.s32.totalorder %s54, %s68
      %p70 = scmp.eq.s32.totalorder %s37, 0
      %p71 = por %p69, %p70
      %s73 = sadd.s32 %s72, 1
      %p76 = scmp.eq.s32.totalorder %s31, 7
      %p77 = scmp.ne.s32.totalorder %s72, %s74
      %p78 = scmp.eq.s32.totalorder %s31, 0
      %p79 = por %p77, %p78
      %p80 = scmp.ne.s32.totalorder %s72, %s74
      %p81 = scmp.eq.s32.totalorder %s36, 7
      %p82 = por %p80, %p81
      %p83 = scmp.ne.s32.totalorder %s74, %s75
      %p84 = scmp.eq.s32.totalorder %s36, 0
      %p85 = por %p83, %p84
      %p86 = scmp.ne.s32.totalorder %s74, %s75
      %p87 = scmp.eq.s32.totalorder %s37, 7
      %p88 = por %p86, %p87
      %p90 = scmp.ne.s32.totalorder %s75, %s89
      %p91 = scmp.eq.s32.totalorder %s37, 0
      %p92 = por %p90, %p91
      %s93 = smul.u32 %s38, 5
      %s94 = sadd.s32 %s93, %s39
      %s95 = smul.u32 %s50, 5
      %s96 = sadd.s32 %s95, %s46
      %s97 = ssub.s32 %s94, %s96
      %p98 = scmp.eq.s32.totalorder %s97, 0
      %s100 = sadd.s32 %s99, 1
      %s101 = scalar_select %p98, %s99, %s100
      %p104 = pneg %p98
      %p105 = scmp.eq.s32.totalorder %s31, 7
      %p106 = por %p104, %p105
      %p107 = scmp.ne.s32.totalorder %s99, %s102
      %p108 = scmp.eq.s32.totalorder %s31, 0
      %p109 = por %p107, %p108
      %p110 = scmp.ne.s32.totalorder %s99, %s102
      %p111 = scmp.eq.s32.totalorder %s36, 7
      %p112 = por %p110, %p111
      %p113 = scmp.ne.s32.totalorder %s102, %s103
      %p114 = scmp.eq.s32.totalorder %s36, 0
      %p115 = por %p113, %p114
      %p116 = scmp.ne.s32.totalorder %s102, %s103
      %p117 = scmp.eq.s32.totalorder %s37, 7
      %p118 = por %p116, %p117
      %p120 = scmp.ne.s32.totalorder %s103, %s119
      %p121 = scmp.eq.s32.totalorder %s37, 0
      %p122 = por %p120, %p121
      %s123 = smul.u32 %s38, 5
      %s124 = sadd.s32 %s123, %s39
      %s125 = sadd.s32 %s124, 1
      %s126 = smul.u32 %s50, 5
      %s127 = sadd.s32 %s126, %s46
      %s128 = sadd.s32 %s127, 1
      %s129 = ssub.s32 %s125, %s128
      %p130 = scmp.eq.s32.totalorder %s129, 0
      %s132 = sadd.s32 %s131, 1
      %s133 = scalar_select %p130, %s131, %s132
      %p136 = pneg %p130
      %p137 = scmp.eq.s32.totalorder %s31, 7
      %p138 = por %p136, %p137
      %p139 = scmp.ne.s32.totalorder %s131, %s134
      %p140 = scmp.eq.s32.totalorder %s31, 0
      %p141 = por %p139, %p140
      %p142 = scmp.ne.s32.totalorder %s131, %s134
      %p143 = scmp.eq.s32.totalorder %s36, 7
      %p144 = por %p142, %p143
      %p145 = scmp.ne.s32.totalorder %s134, %s135
      %p146 = scmp.eq.s32.totalorder %s36, 0
      %p147 = por %p145, %p146
      %p148 = scmp.ne.s32.totalorder %s134, %s135
      %p149 = scmp.eq.s32.totalorder %s37, 7
      %p150 = por %p148, %p149
      %p152 = scmp.ne.s32.totalorder %s135, %s151
      %p153 = scmp.eq.s32.totalorder %s37, 0
      %p154 = por %p152, %p153
      %s155 = smul.u32 %s38, 5
      %s156 = sadd.s32 %s155, %s39
      %s157 = smul.u32 %s50, 5
      %s158 = sadd.s32 %s157, %s46
      %s159 = ssub.s32 %s156, %s158
      %p160 = scmp.eq.s32.totalorder %s159, 0
      %s162 = sadd.s32 %s161, 1
      %s163 = scalar_select %p160, %s161, %s162
      %p166 = pneg %p160
      %p167 = scmp.eq.s32.totalorder %s31, 7
      %p168 = por %p166, %p167
      %p169 = scmp.ne.s32.totalorder %s161, %s164
      %p170 = scmp.eq.s32.totalorder %s31, 0
      %p171 = por %p169, %p170
      %p172 = scmp.ne.s32.totalorder %s161, %s164
      %p173 = scmp.eq.s32.totalorder %s36, 7
      %p174 = por %p172, %p173
      %p175 = scmp.ne.s32.totalorder %s164, %s165
      %p176 = scmp.eq.s32.totalorder %s36, 0
      %p177 = por %p175, %p176
      %p178 = scmp.ne.s32.totalorder %s164, %s165
      %p179 = scmp.eq.s32.totalorder %s37, 7
      %p180 = por %p178, %p179
      %p182 = scmp.ne.s32.totalorder %s165, %s181
      %p183 = scmp.eq.s32.totalorder %s37, 0
      %p184 = por %p182, %p183
      %s185 = smul.u32 %s38, 5
      %s186 = sadd.s32 %s185, %s39
      %s187 = sadd.s32 %s186, 1
      %s188 = smul.u32 %s50, 5
      %s189 = sadd.s32 %s188, %s46
      %s190 = sadd.s32 %s189, 1
      %s191 = ssub.s32 %s187, %s190
      %p192 = scmp.eq.s32.totalorder %s191, 0
      %s194 = sadd.s32 %s193, 1
      %s195 = scalar_select %p192, %s193, %s194
      %p198 = pneg %p192
      %p199 = scmp.eq.s32.totalorder %s31, 7
      %p200 = por %p198, %p199
      %p201 = scmp.ne.s32.totalorder %s193, %s196
      %p202 = scmp.eq.s32.totalorder %s31, 0
      %p203 = por %p201, %p202
      %p204 = scmp.ne.s32.totalorder %s193, %s196
      %p205 = scmp.eq.s32.totalorder %s36, 7
      %p206 = por %p204, %p205
      %p207 = scmp.ne.s32.totalorder %s196, %s197
      %p208 = scmp.eq.s32.totalorder %s36, 0
      %p209 = por %p207, %p208
      %p210 = scmp.ne.s32.totalorder %s196, %s197
      %p211 = scmp.eq.s32.totalorder %s37, 7
      %p212 = por %p210, %p211
      %p214 = scmp.ne.s32.totalorder %s197, %s213
      %p215 = scmp.eq.s32.totalorder %s37, 0
      %p216 = por %p214, %p215
      %s217 = smul.u32 %s38, 4
      %s218 = sadd.s32 %s217, %s39
      %s219 = smul.u32 %s50, 4
      %s220 = sadd.s32 %s219, %s46
      %s221 = ssub.s32 %s218, %s220
      %p222 = scmp.eq.s32.totalorder %s221, 0
      %s224 = sadd.s32 %s223, 1
      %s225 = scalar_select %p222, %s223, %s224
      %p228 = pneg %p222
      %p229 = scmp.eq.s32.totalorder %s31, 7
      %p230 = por %p228, %p229
      %p231 = scmp.ne.s32.totalorder %s223, %s226
      %p232 = scmp.eq.s32.totalorder %s31, 0
      %p233 = por %p231, %p232
      %p234 = scmp.ne.s32.totalorder %s223, %s226
      %p235 = scmp.eq.s32.totalorder %s36, 7
      %p236 = por %p234, %p235
      %p237 = scmp.ne.s32.totalorder %s226, %s227
      %p238 = scmp.eq.s32.totalorder %s36, 0
      %p239 = por %p237, %p238
      %p240 = scmp.ne.s32.totalorder %s226, %s227
      %p241 = scmp.eq.s32.totalorder %s37, 7
      %p242 = por %p240, %p241
      %p244 = scmp.ne.s32.totalorder %s227, %s243
      %p245 = scmp.eq.s32.totalorder %s37, 0
      %p246 = por %p244, %p245
      %s247 = smul.u32 %s38, 4
      %s248 = sadd.s32 %s247, %s39
      %s249 = smul.u32 %s50, 4
      %s250 = sadd.s32 %s249, %s46
      %s251 = ssub.s32 %s248, %s250
      %p252 = scmp.eq.s32.totalorder %s251, 0
      %s254 = sadd.s32 %s253, 1
      %s255 = scalar_select %p252, %s253, %s254
      %p258 = pneg %p252
      %p259 = scmp.eq.s32.totalorder %s31, 7
      %p260 = por %p258, %p259
      %p261 = scmp.ne.s32.totalorder %s253, %s256
      %p262 = scmp.eq.s32.totalorder %s31, 0
      %p263 = por %p261, %p262
      %p264 = scmp.ne.s32.totalorder %s253, %s256
      %p265 = scmp.eq.s32.totalorder %s36, 7
      %p266 = por %p264, %p265
      %p267 = scmp.ne.s32.totalorder %s256, %s257
      %p268 = scmp.eq.s32.totalorder %s36, 0
      %p269 = por %p267, %p268
      %p270 = scmp.ne.s32.totalorder %s256, %s257
      %p271 = scmp.eq.s32.totalorder %s37, 7
      %p272 = por %p270, %p271
      %p274 = scmp.ne.s32.totalorder %s257, %s273
      %p275 = scmp.eq.s32.totalorder %s37, 0
      %p276 = por %p274, %p275
      %p277 = scmp.le.s32.totalorder 1, %s31
      %p278 = scmp.lt.s32.totalorder %s31, 9
      %p279 = pnand %p277, %p278
      %p280 = pneg %p279
      // Predicated region
      $region9: #{tpu_custom_call.1} parent=5 // pred_check
        _
      $region10: #{tpu_custom_call.1} parent=5 // pred_check_branch
        %282 = sbr.rel (%p279) target = $region12
      $region11: #{tpu_custom_call.1} parent=5 // pred_region
        %s283 = ssub.s32 %s31, 1
        // Predicated region
        $region13: #{tpu_custom_call.1} parent=11 // pred_check
          %p284 = pneg %p64
        $region14: #{tpu_custom_call.1} parent=11 // pred_check_branch
          %286 = sbr.rel (%p284) target = $region16
        $region15: #{tpu_custom_call.1} parent=11 // pred_region
          %s288 = ssub.s32 16, 16
          %289 = vsyncadd [#allocation7], %s288
          %292 = dma.hbm_to_smem %s0, 16, [#allocation4], [#allocation7]
        $region16: #{tpu_custom_call.1} parent=11 // pred_fallthru
          _
        // Predicated region
        $region17: #{tpu_custom_call.1} parent=11 // pred_check
          %p293 = pneg %p85
        $region18: #{tpu_custom_call.1} parent=11 // pred_check_branch
          %295 = sbr.rel (%p293) target = $region20
        $region19: #{tpu_custom_call.1} parent=11 // pred_region
          %s297 = ssub.s32 16, 16
          %298 = vsyncadd [#allocation8], %s297
          %s300 = sshll.u32 %s1, 4
          %s301 = int_to_ptr.vmem [resolvable:$true] %s300
          %303 = dma.vmem_to_smem %s301, 16, [#allocation9], [#allocation8]
        $region20: #{tpu_custom_call.1} parent=11 // pred_fallthru
          _
      $region12: #{tpu_custom_call.1} parent=5 // pred_fallthru
        _
      %p304 = scmp.lt.s32.totalorder %s31, 8
      // Predicated region
      $region21: #{tpu_custom_call.1} parent=5 // pred_check
        %p305 = pneg %p304
      $region22: #{tpu_custom_call.1} parent=5 // pred_check_branch
        %307 = sbr.rel (%p305) target = $region24
      $region23: #{tpu_custom_call.1} parent=5 // pred_region
        // Predicated region
        $region25: #{tpu_custom_call.1} parent=23 // pred_check
          %p308 = pneg %p109
        $region26: #{tpu_custom_call.1} parent=23 // pred_check_branch
          %310 = sbr.rel (%p308) target = $region28
        $region27: #{tpu_custom_call.1} parent=23 // pred_region
          %s311 = sand.u32 %s99, 1
          %s312 = scalar_lea.sflag [#allocation5], %s311
          %s313 = sand.u32 %s99, 1
          %s314 = smul.addr %s313, 16
          %s315 = scalar_lea.vmem [#allocation10], %s314
          %s316 = smul.u32 %s38, 5
          %s317 = sadd.s32 %s316, %s39
          %s318 = smul.u32 2, %s317
          %s320 = ssub.s32 256, 256
          %321 = vsyncadd %s312, %s320
          %s322 = smul.addr %s318, 128
          %s323 = scalar_lea.hbm %s2, %s322
          %s324 = sshll.u32 %s315, 4
          %s325 = int_to_ptr.vmem [resolvable:$true] %s324
          %330 = dma.hbm_to_vmem [thread:$0]  %s323, 256, %s325, %s312, 128, 128, 8
        $region28: #{tpu_custom_call.1} parent=23 // pred_fallthru
          _
        // Predicated region
        $region29: #{tpu_custom_call.1} parent=23 // pred_check
          %p331 = pneg %p141
        $region30: #{tpu_custom_call.1} parent=23 // pred_check_branch
          %333 = sbr.rel (%p331) target = $region32
        $region31: #{tpu_custom_call.1} parent=23 // pred_region
          %s334 = sand.u32 %s31, 1
          %s335 = scalar_lea.sflag [#allocation12], %s334
          %s336 = sand.u32 %s131, 1
          %s337 = smul.addr %s336, 16
          %s338 = scalar_lea.vmem [#allocation11], %s337
          %s339 = smul.u32 %s38, 5
          %s340 = sadd.s32 %s339, %s39
          %s341 = sadd.s32 %s340, 1
          %s342 = smul.u32 2, %s341
          %s344 = ssub.s32 256, 256
          %345 = vsyncadd %s335, %s344
          %s346 = smul.addr %s342, 128
          %s347 = scalar_lea.hbm %s3, %s346
          %s348 = sshll.u32 %s338, 4
          %s349 = int_to_ptr.vmem [resolvable:$true] %s348
          %354 = dma.hbm_to_vmem [thread:$0]  %s347, 256, %s349, %s335, 128, 128, 8
        $region32: #{tpu_custom_call.1} parent=23 // pred_fallthru
          _
        // Predicated region
        $region33: #{tpu_custom_call.1} parent=23 // pred_check
          %p355 = pneg %p171
        $region34: #{tpu_custom_call.1} parent=23 // pred_check_branch
          %357 = sbr.rel (%p355) target = $region36
        $region35: #{tpu_custom_call.1} parent=23 // pred_region
          %s358 = sand.u32 %s31, 1
          %s359 = scalar_lea.sflag [#allocation12], %s358
          %s360 = sand.u32 %s161, 1
          %s361 = smul.addr %s360, 16
          %s362 = scalar_lea.vmem [#allocation13], %s361
          %s363 = smul.u32 %s38, 5
          %s364 = sadd.s32 %s363, %s39
          %s365 = smul.u32 2, %s364
          %s367 = ssub.s32 256, 256
          %368 = vsyncadd %s359, %s367
          %s369 = smul.addr %s365, 128
          %s370 = scalar_lea.hbm %s4, %s369
          %s371 = sshll.u32 %s362, 4
          %s372 = int_to_ptr.vmem [resolvable:$true] %s371
          %377 = dma.hbm_to_vmem [thread:$0]  %s370, 256, %s372, %s359, 128, 128, 8
        $region36: #{tpu_custom_call.1} parent=23 // pred_fallthru
          _
        // Predicated region
        $region37: #{tpu_custom_call.1} parent=23 // pred_check
          %p378 = pneg %p203
        $region38: #{tpu_custom_call.1} parent=23 // pred_check_branch
          %380 = sbr.rel (%p378) target = $region40
        $region39: #{tpu_custom_call.1} parent=23 // pred_region
          %s381 = sand.u32 %s193, 1
          %s382 = scalar_lea.sflag [#allocation15], %s381
          %s383 = sand.u32 %s193, 1
          %s384 = smul.addr %s383, 16
          %s385 = scalar_lea.vmem [#allocation14], %s384
          %s386 = smul.u32 %s38, 5
          %s387 = sadd.s32 %s386, %s39
          %s388 = sadd.s32 %s387, 1
          %s389 = smul.u32 2, %s388
          %s391 = ssub.s32 256, 256
          %392 = vsyncadd %s382, %s391
          %s393 = smul.addr %s389, 128
          %s394 = scalar_lea.hbm %s5, %s393
          %s395 = sshll.u32 %s385, 4
          %s396 = int_to_ptr.vmem [resolvable:$true] %s395
          %401 = dma.hbm_to_vmem [thread:$0]  %s394, 256, %s396, %s382, 128, 128, 8
        $region40: #{tpu_custom_call.1} parent=23 // pred_fallthru
          _
      $region24: #{tpu_custom_call.1} parent=5 // pred_fallthru
        _
      %p402 = scmp.le.s32.totalorder 1, %s31
      %p403 = scmp.lt.s32.totalorder %s31, 9
      %p404 = pnand %p402, %p403
      %p405 = pneg %p404
      // Predicated region
      $region41: #{tpu_custom_call.1} parent=5 // pred_check
        _
      $region42: #{tpu_custom_call.1} parent=5 // pred_check_branch
        %407 = sbr.rel (%p404) target = $region44
      $region43: #{tpu_custom_call.1} parent=5 // pred_region
        %s408 = ssub.s32 %s31, 1
        // Predicated region
        $region45: #{tpu_custom_call.1} parent=43 // pred_check
          %p409 = pneg %p64
        $region46: #{tpu_custom_call.1} parent=43 // pred_check_branch
          %411 = sbr.rel (%p409) target = $region48
        $region47: #{tpu_custom_call.1} parent=43 // pred_region
          %412 = dma.done [#allocation7], 16
        $region48: #{tpu_custom_call.1} parent=43 // pred_fallthru
          _
        // Predicated region
        $region49: #{tpu_custom_call.1} parent=43 // pred_check
          %p413 = pneg %p85
        $region50: #{tpu_custom_call.1} parent=43 // pred_check_branch
          %415 = sbr.rel (%p413) target = $region52
        $region51: #{tpu_custom_call.1} parent=43 // pred_region
          %416 = dma.done [#allocation8], 16
        $region52: #{tpu_custom_call.1} parent=43 // pred_fallthru
          _
        %s417 = sand.u32 %s102, 1
        %s418 = scalar_lea.sflag [#allocation5], %s417
        %s419 = sand.u32 %s102, 1
        %s420 = smul.addr %s419, 16
        %s421 = scalar_lea.vmem [#allocation10], %s420
        // Predicated region
        $region53: #{tpu_custom_call.1} parent=43 // pred_check
          %p422 = pneg %p115
        $region54: #{tpu_custom_call.1} parent=43 // pred_check_branch
          %424 = sbr.rel (%p422) target = $region56
        $region55: #{tpu_custom_call.1} parent=43 // pred_region
          %425 = dma.done %s418, 256
        $region56: #{tpu_custom_call.1} parent=43 // pred_fallthru
          _
        %s426 = sand.u32 %s36, 1
        %s427 = scalar_lea.sflag [#allocation12], %s426
        %s428 = sand.u32 %s134, 1
        %s429 = smul.addr %s428, 16
        %s430 = scalar_lea.vmem [#allocation11], %s429
        // Predicated region
        $region57: #{tpu_custom_call.1} parent=43 // pred_check
          %p431 = pneg %p147
        $region58: #{tpu_custom_call.1} parent=43 // pred_check_branch
          %433 = sbr.rel (%p431) target = $region60
        $region59: #{tpu_custom_call.1} parent=43 // pred_region
          %434 = dma.done %s427, 256
        $region60: #{tpu_custom_call.1} parent=43 // pred_fallthru
          _
        %s435 = sand.u32 %s36, 1
        %s436 = scalar_lea.sflag [#allocation12], %s435
        %s437 = sand.u32 %s164, 1
        %s438 = smul.addr %s437, 16
        %s439 = scalar_lea.vmem [#allocation13], %s438
        // Predicated region
        $region61: #{tpu_custom_call.1} parent=43 // pred_check
          %p440 = pneg %p177
        $region62: #{tpu_custom_call.1} parent=43 // pred_check_branch
          %442 = sbr.rel (%p440) target = $region64
        $region63: #{tpu_custom_call.1} parent=43 // pred_region
          %443 = dma.done %s436, 256
        $region64: #{tpu_custom_call.1} parent=43 // pred_fallthru
          _
        %s444 = sand.u32 %s196, 1
        %s445 = scalar_lea.sflag [#allocation15], %s444
        %s446 = sand.u32 %s196, 1
        %s447 = smul.addr %s446, 16
        %s448 = scalar_lea.vmem [#allocation14], %s447
        // Predicated region
        $region65: #{tpu_custom_call.1} parent=43 // pred_check
          %p449 = pneg %p209
        $region66: #{tpu_custom_call.1} parent=43 // pred_check_branch
          %451 = sbr.rel (%p449) target = $region68
        $region67: #{tpu_custom_call.1} parent=43 // pred_region
          %452 = dma.done %s445, 256
        $region68: #{tpu_custom_call.1} parent=43 // pred_fallthru
          _
        %453 = sfence
        %p454 = pneg %p64
        %p455 = pneg %p61
        %p456 = pneg %p85
        %p457 = pneg %p82
        %s458 = sand.u32 %s102, 1
        %s459 = scalar_lea.sflag [#allocation5], %s458
        %s460 = sand.u32 %s102, 1
        %s461 = smul.addr %s460, 16
        %s462 = scalar_lea.vmem [#allocation10], %s461
        %p463 = pneg %p115
        %p464 = pneg %p112
        %s465 = sand.u32 %s36, 1
        %s466 = scalar_lea.sflag [#allocation12], %s465
        %s467 = sand.u32 %s134, 1
        %s468 = smul.addr %s467, 16
        %s469 = scalar_lea.vmem [#allocation11], %s468
        %p470 = pneg %p147
        %p471 = pneg %p144
        %s472 = sand.u32 %s36, 1
        %s473 = scalar_lea.sflag [#allocation12], %s472
        %s474 = sand.u32 %s164, 1
        %s475 = smul.addr %s474, 16
        %s476 = scalar_lea.vmem [#allocation13], %s475
        %p477 = pneg %p177
        %p478 = pneg %p174
        %s479 = sand.u32 %s196, 1
        %s480 = scalar_lea.sflag [#allocation15], %s479
        %s481 = sand.u32 %s196, 1
        %s482 = smul.addr %s481, 16
        %s483 = scalar_lea.vmem [#allocation14], %s482
        %p484 = pneg %p209
        %p485 = pneg %p206
        %p486 = pneg %p239
        %p487 = pneg %p236
        %s488 = sand.u32 %s226, 1
        %s489 = scalar_lea.sflag [#allocation6], %s488
        %s490 = sand.u32 %s226, 1
        %s491 = smul.addr %s490, 16
        %s492 = scalar_lea.vmem [#allocation16], %s491
        %p493 = pneg %p269
        %p494 = pneg %p266
        %s495 = sand.u32 %s256, 1
        %s496 = scalar_lea.sflag [#allocation18], %s495
        %s497 = sand.u32 %s256, 1
        %s498 = smul.addr %s497, 16
        %s499 = scalar_lea.vmem [#allocation17], %s498
        %s500 = smul.u32 %s40, 5
        %s501 = sadd.s32 %s500, %s41
        %s502 = smul.u32 2, %s501
        %s503 = smul.u32 %s40, 5
        %s504 = sadd.s32 %s503, %s41
        %s505 = sadd.s32 %s504, 1
        %s506 = smul.u32 2, %s505
        %s507 = smul.u32 %s40, 5
        %s508 = sadd.s32 %s507, %s41
        %s509 = smul.u32 2, %s508
        %s510 = smul.u32 %s40, 5
        %s511 = sadd.s32 %s510, %s41
        %s512 = sadd.s32 %s511, 1
        %s513 = smul.u32 2, %s512
        %s514 = smul.u32 %s40, 4
        %s515 = sadd.s32 %s514, %s41
        %s516 = smul.u32 2, %s515
        %s517 = smul.u32 %s40, 4
        %s518 = sadd.s32 %s517, %s41
        %s519 = smul.u32 2, %s518
        %v520 = vld [vmem:[%s421] sm:$0xff]
        %v521 = vld [vmem:[%s421 + $0x8] sm:$0xff]
        %522 = vst [vmem:[#allocation2] sm:$0xff] %v520
        %523 = vst [vmem:[#allocation2 + $0x8] sm:$0xff] %v521
        %v524 = vld [vmem:[%s430] sm:$0xff]
        %v525 = vld [vmem:[%s430 + $0x8] sm:$0xff]
        %526 = vst [vmem:[#allocation2 + $0x10] sm:$0xff] %v524
        %527 = vst [vmem:[#allocation2 + $0x18] sm:$0xff] %v525
        %v528 = vld [vmem:[%s439] sm:$0xff]
        %v529 = vld [vmem:[%s439 + $0x8] sm:$0xff]
        %530 = vst [vmem:[#allocation3] sm:$0xff] %v528
        %531 = vst [vmem:[#allocation3 + $0x8] sm:$0xff] %v529
        %v532 = vld [vmem:[%s448] sm:$0xff]
        %v533 = vld [vmem:[%s448 + $0x8] sm:$0xff]
        %534 = vst [vmem:[#allocation3 + $0x10] sm:$0xff] %v532
        %535 = vst [vmem:[#allocation3 + $0x18] sm:$0xff] %v533
        %v536 = vlaneseq
        %v537 = vand.u32 %v536, 127
        %v538 = vld [vmem:[#allocation2 + $0x10] sm:$0xff]
        %v539 = vld [vmem:[#allocation2 + $0x18] sm:$0xff]
        %v540 = vld [vmem:[#allocation2 + $0xf] sm:$0xff]
        %v541 = vld [vmem:[#allocation2 + $0x17] sm:$0xff]
        %542 = vrot.lane.b32.xlu0 %v538, 1
        %v543 = vpop.permute.xlu0 %542
        %544 = vrot.lane.b32.xlu0 %v539, 1
        %v545 = vpop.permute.xlu0 %544
        %546 = vrot.lane.b32.xlu0 %v540, 1
        %v547 = vpop.permute.xlu0 %546
        %548 = vrot.lane.b32.xlu0 %v541, 1
        %v549 = vpop.permute.xlu0 %548
        %vm550 = vcmp.ge.s32.totalorder %v537, 1
        %v551 = vsel %vm550, %v543, %v547
        %v552 = vsel %vm550, %v545, %v549
        %v553 = vld [vmem:[#allocation3 + $0x10] sm:$0xff]
        %v554 = vld [vmem:[#allocation3 + $0x18] sm:$0xff]
        %v555 = vld [vmem:[#allocation3 + $0xf] sm:$0xff]
        %v556 = vld [vmem:[#allocation3 + $0x17] sm:$0xff]
        %557 = vrot.lane.b32.xlu0 %v553, 1
        %v558 = vpop.permute.xlu0 %557
        %559 = vrot.lane.b32.xlu0 %v554, 1
        %v560 = vpop.permute.xlu0 %559
        %561 = vrot.lane.b32.xlu0 %v555, 1
        %v562 = vpop.permute.xlu0 %561
        %563 = vrot.lane.b32.xlu0 %v556, 1
        %v564 = vpop.permute.xlu0 %563
        %v565 = vsel %vm550, %v558, %v562
        %v566 = vsel %vm550, %v560, %v564
        %v567 = vmul.f32 %v551, %v551
        %v568 = vmul.f32 %v552, %v552
        %v569 = vmul.f32 %v565, %v565
        %v570 = vmul.f32 %v566, %v566
        %v571 = vadd.f32 %v567, %v569
        %v572 = vadd.f32 %v568, %v570
        %v573 = vrsqrt.pop %v571
        %v574 = vmul.f32 %v571, %v573
        %vm575 = vcmp.eq.f32.partialorder %v571, inf
        %v576 = vsel %vm575, %v571, %v574
        %vm577 = vcmp.eq.f32.partialorder %v571, 0.0
        %v578 = vand.u32 %v571, 2147483648
        %v579 = vsel %vm577, %v578, %v576
        %v580 = vrsqrt.pop %v572
        %v581 = vmul.f32 %v572, %v580
        %vm582 = vcmp.eq.f32.partialorder %v572, inf
        %v583 = vsel %vm582, %v572, %v581
        %vm584 = vcmp.eq.f32.partialorder %v572, 0.0
        %v585 = vand.u32 %v572, 2147483648
        %v586 = vsel %vm584, %v585, %v583
        %587 = vrot.lane.b32.xlu0 %v538, 2
        %v588 = vpop.permute.xlu0 %587
        %589 = vrot.lane.b32.xlu0 %v539, 2
        %v590 = vpop.permute.xlu0 %589
        %591 = vrot.lane.b32.xlu0 %v540, 2
        %v592 = vpop.permute.xlu0 %591
        %593 = vrot.lane.b32.xlu0 %v541, 2
        %v594 = vpop.permute.xlu0 %593
        %vm595 = vcmp.ge.s32.totalorder %v537, 2
        %v596 = vsel %vm595, %v588, %v592
        %v597 = vsel %vm595, %v590, %v594
        %598 = vrot.lane.b32.xlu0 %v553, 2
        %v599 = vpop.permute.xlu0 %598
        %600 = vrot.lane.b32.xlu0 %v554, 2
        %v601 = vpop.permute.xlu0 %600
        %602 = vrot.lane.b32.xlu0 %v555, 2
        %v603 = vpop.permute.xlu0 %602
        %604 = vrot.lane.b32.xlu0 %v556, 2
        %v605 = vpop.permute.xlu0 %604
        %v606 = vsel %vm595, %v599, %v603
        %v607 = vsel %vm595, %v601, %v605
        %v608 = vmul.f32 %v596, %v596
        %v609 = vmul.f32 %v597, %v597
        %v610 = vmul.f32 %v606, %v606
        %v611 = vmul.f32 %v607, %v607
        %v612 = vadd.f32 %v608, %v610
        %v613 = vadd.f32 %v609, %v611
        %v614 = vrsqrt.pop %v612
        %v615 = vmul.f32 %v612, %v614
        %vm616 = vcmp.eq.f32.partialorder %v612, inf
        %v617 = vsel %vm616, %v612, %v615
        %vm618 = vcmp.eq.f32.partialorder %v612, 0.0
        %v619 = vand.u32 %v612, 2147483648
        %v620 = vsel %vm618, %v619, %v617
        %v621 = vrsqrt.pop %v613
        %v622 = vmul.f32 %v613, %v621
        %vm623 = vcmp.eq.f32.partialorder %v613, inf
        %v624 = vsel %vm623, %v613, %v622
        %vm625 = vcmp.eq.f32.partialorder %v613, 0.0
        %v626 = vand.u32 %v613, 2147483648
        %v627 = vsel %vm625, %v626, %v624
        %v628 = vadd.f32 %v620, %v620
        %v629 = vadd.f32 %v627, %v627
        %v630 = vmul.f32 %v628, %v620
        %v631 = vmul.f32 %v629, %v627
        %v632 = vsub.f32 %v630, 1.0
        %v633 = vsub.f32 %v631, 1.0
        %v634 = vmul.f32 %v628, %v632
        %v635 = vmul.f32 %v629, %v633
        %v636 = vsub.f32 %v634, %v620
        %v637 = vsub.f32 %v635, %v627
        %v638 = vadd.f32 %v579, %v579
        %v639 = vadd.f32 %v586, %v586
        %s640 = sld [smem:[#allocation4 + $0x3]]
        %s641 = sld [smem:[#allocation9 + $0x3]]
        %v642 = vstv %s640
        %v643 = vmul.f32 %v642, %v636
        %v644 = vmul.f32 %v642, %v637
        %v645 = vstv %s641
        %v646 = vmul.f32 %v645, %v636
        %v647 = vmul.f32 %v645, %v637
        %s648 = sld [smem:[#allocation4 + $0x2]]
        %s649 = sld [smem:[#allocation9 + $0x2]]
        %v650 = vstv %s648
        %v651 = vmul.f32 %v650, %v632
        %v652 = vmul.f32 %v650, %v633
        %v653 = vadd.f32 %v643, %v651
        %v654 = vadd.f32 %v644, %v652
        %v655 = vstv %s649
        %v656 = vmul.f32 %v655, %v632
        %v657 = vmul.f32 %v655, %v633
        %v658 = vadd.f32 %v646, %v656
        %v659 = vadd.f32 %v647, %v657
        %s660 = sld [smem:[#allocation4 + $0x1]]
        %s661 = sld [smem:[#allocation9 + $0x1]]
        %v662 = vstv %s660
        %v663 = vmul.f32 %v662, %v620
        %v664 = vmul.f32 %v662, %v627
        %v665 = vadd.f32 %v653, %v663
        %v666 = vadd.f32 %v654, %v664
        %v667 = vstv %s661
        %v668 = vmul.f32 %v667, %v620
        %v669 = vmul.f32 %v667, %v627
        %v670 = vadd.f32 %v658, %v668
        %v671 = vadd.f32 %v659, %v669
        %s672 = sld [smem:[#allocation4]]
        %s673 = sld [smem:[#allocation9]]
        %v674 = vstv %s672
        %v675 = vadd.f32 %v665, %v674
        %v676 = vadd.f32 %v666, %v674
        %v677 = vstv %s673
        %v678 = vadd.f32 %v670, %v677
        %v679 = vadd.f32 %v671, %v677
        %s680 = sld [smem:[#allocation4 + $0x7]]
        %s681 = sld [smem:[#allocation9 + $0x7]]
        %v682 = vstv %s680
        %v683 = vmul.f32 %v682, %v636
        %v684 = vmul.f32 %v682, %v637
        %v685 = vstv %s681
        %v686 = vmul.f32 %v685, %v636
        %v687 = vmul.f32 %v685, %v637
        %s688 = sld [smem:[#allocation4 + $0x6]]
        %s689 = sld [smem:[#allocation9 + $0x6]]
        %v690 = vstv %s688
        %v691 = vmul.f32 %v690, %v632
        %v692 = vmul.f32 %v690, %v633
        %v693 = vadd.f32 %v683, %v691
        %v694 = vadd.f32 %v684, %v692
        %v695 = vstv %s689
        %v696 = vmul.f32 %v695, %v632
        %v697 = vmul.f32 %v695, %v633
        %v698 = vadd.f32 %v686, %v696
        %v699 = vadd.f32 %v687, %v697
        %s700 = sld [smem:[#allocation4 + $0x5]]
        %s701 = sld [smem:[#allocation9 + $0x5]]
        %v702 = vstv %s700
        %v703 = vmul.f32 %v702, %v620
        %v704 = vmul.f32 %v702, %v627
        %v705 = vadd.f32 %v693, %v703
        %v706 = vadd.f32 %v694, %v704
        %v707 = vstv %s701
        %v708 = vmul.f32 %v707, %v620
        %v709 = vmul.f32 %v707, %v627
        %v710 = vadd.f32 %v698, %v708
        %v711 = vadd.f32 %v699, %v709
        %s712 = sld [smem:[#allocation4 + $0x4]]
        %s713 = sld [smem:[#allocation9 + $0x4]]
        %v714 = vstv %s712
        %v715 = vadd.f32 %v705, %v714
        %v716 = vadd.f32 %v706, %v714
        %v717 = vstv %s713
        %v718 = vadd.f32 %v710, %v717
        %v719 = vadd.f32 %v711, %v717
        %v720 = vmul.f32 %v579, %v715
        %v721 = vmul.f32 %v586, %v716
        %v722 = vadd.f32 %v675, %v720
        %v723 = vadd.f32 %v676, %v721
        %v724 = vmul.f32 %v579, %v718
        %v725 = vmul.f32 %v586, %v719
        %v726 = vadd.f32 %v678, %v724
        %v727 = vadd.f32 %v679, %v725
        %v728 = vmul.f32 %v638, %v579
        %v729 = vmul.f32 %v639, %v586
        %v730 = vsub.f32 %v728, 1.0
        %v731 = vsub.f32 %v729, 1.0
        %s732 = sld [smem:[#allocation4 + $0xb]]
        %s733 = sld [smem:[#allocation9 + $0xb]]
        %v734 = vstv %s732
        %v735 = vmul.f32 %v734, %v636
        %v736 = vmul.f32 %v734, %v637
        %v737 = vstv %s733
        %v738 = vmul.f32 %v737, %v636
        %v739 = vmul.f32 %v737, %v637
        %s740 = sld [smem:[#allocation4 + $0xa]]
        %s741 = sld [smem:[#allocation9 + $0xa]]
        %v742 = vstv %s740
        %v743 = vmul.f32 %v742, %v632
        %v744 = vmul.f32 %v742, %v633
        %v745 = vadd.f32 %v735, %v743
        %v746 = vadd.f32 %v736, %v744
        %v747 = vstv %s741
        %v748 = vmul.f32 %v747, %v632
        %v749 = vmul.f32 %v747, %v633
        %v750 = vadd.f32 %v738, %v748
        %v751 = vadd.f32 %v739, %v749
        %s752 = sld [smem:[#allocation4 + $0x9]]
        %s753 = sld [smem:[#allocation9 + $0x9]]
        %v754 = vstv %s752
        %v755 = vmul.f32 %v754, %v620
        %v756 = vmul.f32 %v754, %v627
        %v757 = vadd.f32 %v745, %v755
        %v758 = vadd.f32 %v746, %v756
        %v759 = vstv %s753
        %v760 = vmul.f32 %v759, %v620
        %v761 = vmul.f32 %v759, %v627
        %v762 = vadd.f32 %v750, %v760
        %v763 = vadd.f32 %v751, %v761
        %s764 = sld [smem:[#allocation4 + $0x8]]
        %s765 = sld [smem:[#allocation9 + $0x8]]
        %v766 = vstv %s764
        %v767 = vadd.f32 %v757, %v766
        %v768 = vadd.f32 %v758, %v766
        %v769 = vstv %s765
        %v770 = vadd.f32 %v762, %v769
        %v771 = vadd.f32 %v763, %v769
        %v772 = vmul.f32 %v730, %v767
        %v773 = vmul.f32 %v731, %v768
        %v774 = vadd.f32 %v722, %v772
        %v775 = vadd.f32 %v723, %v773
        %v776 = vmul.f32 %v730, %v770
        %v777 = vmul.f32 %v731, %v771
        %v778 = vadd.f32 %v726, %v776
        %v779 = vadd.f32 %v727, %v777
        %v780 = vmul.f32 %v638, %v730
        %v781 = vmul.f32 %v639, %v731
        %v782 = vsub.f32 %v780, %v579
        %v783 = vsub.f32 %v781, %v586
        %s784 = sld [smem:[#allocation4 + $0xf]]
        %s785 = sld [smem:[#allocation9 + $0xf]]
        %v786 = vstv %s784
        %v787 = vmul.f32 %v786, %v636
        %v788 = vmul.f32 %v786, %v637
        %v789 = vstv %s785
        %v790 = vmul.f32 %v789, %v636
        %v791 = vmul.f32 %v789, %v637
        %s792 = sld [smem:[#allocation4 + $0xe]]
        %s793 = sld [smem:[#allocation9 + $0xe]]
        %v794 = vstv %s792
        %v795 = vmul.f32 %v794, %v632
        %v796 = vmul.f32 %v794, %v633
        %v797 = vadd.f32 %v787, %v795
        %v798 = vadd.f32 %v788, %v796
        %v799 = vstv %s793
        %v800 = vmul.f32 %v799, %v632
        %v801 = vmul.f32 %v799, %v633
        %v802 = vadd.f32 %v790, %v800
        %v803 = vadd.f32 %v791, %v801
        %s804 = sld [smem:[#allocation4 + $0xd]]
        %s805 = sld [smem:[#allocation9 + $0xd]]
        %v806 = vstv %s804
        %v807 = vmul.f32 %v806, %v620
        %v808 = vmul.f32 %v806, %v627
        %v809 = vadd.f32 %v797, %v807
        %v810 = vadd.f32 %v798, %v808
        %v811 = vstv %s805
        %v812 = vmul.f32 %v811, %v620
        %v813 = vmul.f32 %v811, %v627
        %v814 = vadd.f32 %v802, %v812
        %v815 = vadd.f32 %v803, %v813
        %s816 = sld [smem:[#allocation4 + $0xc]]
        %s817 = sld [smem:[#allocation9 + $0xc]]
        %v818 = vstv %s816
        %v819 = vadd.f32 %v809, %v818
        %v820 = vadd.f32 %v810, %v818
        %v821 = vstv %s817
        %v822 = vadd.f32 %v814, %v821
        %v823 = vadd.f32 %v815, %v821
        %v824 = vmul.f32 %v782, %v819
        %v825 = vmul.f32 %v783, %v820
        %v826 = vadd.f32 %v774, %v824
        %v827 = vadd.f32 %v775, %v825
        %v828 = vmul.f32 %v782, %v822
        %v829 = vmul.f32 %v783, %v823
        %v830 = vadd.f32 %v778, %v828
        %v831 = vadd.f32 %v779, %v829
        %v832 = vmul.f32 %v538, %v826
        %v833 = vmul.f32 %v539, %v827
        %v834 = vmul.f32 %v553, %v830
        %v835 = vmul.f32 %v554, %v831
        %v836 = vsub.f32 %v832, %v834
        %v837 = vsub.f32 %v833, %v835
        %v838 = vadd.f32 %v836, 0.0
        %v839 = vadd.f32 %v837, 0.0
        %v840 = vmul.f32 %v538, %v830
        %v841 = vmul.f32 %v539, %v831
        %v842 = vmul.f32 %v553, %v826
        %v843 = vmul.f32 %v554, %v827
        %v844 = vadd.f32 %v840, %v842
        %v845 = vadd.f32 %v841, %v843
        %v846 = vadd.f32 %v844, 0.0
        %v847 = vadd.f32 %v845, 0.0
        %v848 = vmul.f32 %v538, %v538
        %v849 = vmul.f32 %v539, %v539
        %v850 = vmul.f32 %v553, %v553
        %v851 = vmul.f32 %v554, %v554
        %v852 = vadd.f32 %v848, %v850
        %v853 = vadd.f32 %v849, %v851
        %v854 = vrsqrt.pop %v852
        %v855 = vmul.f32 %v852, %v854
        %vm856 = vcmp.eq.f32.partialorder %v852, inf
        %v857 = vsel %vm856, %v852, %v855
        %vm858 = vcmp.eq.f32.partialorder %v852, 0.0
        %v859 = vand.u32 %v852, 2147483648
        %v860 = vsel %vm858, %v859, %v857
        %v861 = vrsqrt.pop %v853
        %v862 = vmul.f32 %v853, %v861
        %vm863 = vcmp.eq.f32.partialorder %v853, inf
        %v864 = vsel %vm863, %v853, %v862
        %vm865 = vcmp.eq.f32.partialorder %v853, 0.0
        %v866 = vand.u32 %v853, 2147483648
        %v867 = vsel %vm865, %v866, %v864
        %868 = vrot.lane.b32.xlu0 %v538, 3
        %v869 = vpop.permute.xlu0 %868
        %870 = vrot.lane.b32.xlu0 %v539, 3
        %v871 = vpop.permute.xlu0 %870
        %872 = vrot.lane.b32.xlu0 %v540, 3
        %v873 = vpop.permute.xlu0 %872
        %874 = vrot.lane.b32.xlu0 %v541, 3
        %v875 = vpop.permute.xlu0 %874
        %vm876 = vcmp.ge.s32.totalorder %v537, 3
        %v877 = vsel %vm876, %v869, %v873
        %v878 = vsel %vm876, %v871, %v875
        %879 = vrot.lane.b32.xlu0 %v553, 3
        %v880 = vpop.permute.xlu0 %879
        %881 = vrot.lane.b32.xlu0 %v554, 3
        %v882 = vpop.permute.xlu0 %881
        %883 = vrot.lane.b32.xlu0 %v555, 3
        %v884 = vpop.permute.xlu0 %883
        %885 = vrot.lane.b32.xlu0 %v556, 3
        %v886 = vpop.permute.xlu0 %885
        %v887 = vsel %vm876, %v880, %v884
        %v888 = vsel %vm876, %v882, %v886
        %v889 = vmul.f32 %v877, %v877
        %v890 = vmul.f32 %v878, %v878
        %v891 = vmul.f32 %v887, %v887
        %v892 = vmul.f32 %v888, %v888
        %v893 = vadd.f32 %v889, %v891
        %v894 = vadd.f32 %v890, %v892
        %v895 = vrsqrt.pop %v893
        %v896 = vmul.f32 %v893, %v895
        %vm897 = vcmp.eq.f32.partialorder %v893, inf
        %v898 = vsel %vm897, %v893, %v896
        %vm899 = vcmp.eq.f32.partialorder %v893, 0.0
        %v900 = vand.u32 %v893, 2147483648
        %v901 = vsel %vm899, %v900, %v898
        %v902 = vrsqrt.pop %v894
        %v903 = vmul.f32 %v894, %v902
        %vm904 = vcmp.eq.f32.partialorder %v894, inf
        %v905 = vsel %vm904, %v894, %v903
        %vm906 = vcmp.eq.f32.partialorder %v894, 0.0
        %v907 = vand.u32 %v894, 2147483648
        %v908 = vsel %vm906, %v907, %v905
        %v909 = vadd.f32 %v901, %v901
        %v910 = vadd.f32 %v908, %v908
        %v911 = vmul.f32 %v909, %v901
        %v912 = vmul.f32 %v910, %v908
        %v913 = vsub.f32 %v911, 1.0
        %v914 = vsub.f32 %v912, 1.0
        %v915 = vmul.f32 %v909, %v913
        %v916 = vmul.f32 %v910, %v914
        %v917 = vsub.f32 %v915, %v901
        %v918 = vsub.f32 %v916, %v908
        %v919 = vadd.f32 %v860, %v860
        %v920 = vadd.f32 %v867, %v867
        %s921 = sld [smem:[#allocation4 + $0x13]]
        %s922 = sld [smem:[#allocation9 + $0x13]]
        %v923 = vstv %s921
        %v924 = vmul.f32 %v923, %v917
        %v925 = vmul.f32 %v923, %v918
        %v926 = vstv %s922
        %v927 = vmul.f32 %v926, %v917
        %v928 = vmul.f32 %v926, %v918
        %s929 = sld [smem:[#allocation4 + $0x12]]
        %s930 = sld [smem:[#allocation9 + $0x12]]
        %v931 = vstv %s929
        %v932 = vmul.f32 %v931, %v913
        %v933 = vmul.f32 %v931, %v914
        %v934 = vadd.f32 %v924, %v932
        %v935 = vadd.f32 %v925, %v933
        %v936 = vstv %s930
        %v937 = vmul.f32 %v936, %v913
        %v938 = vmul.f32 %v936, %v914
        %v939 = vadd.f32 %v927, %v937
        %v940 = vadd.f32 %v928, %v938
        %s941 = sld [smem:[#allocation4 + $0x11]]
        %s942 = sld [smem:[#allocation9 + $0x11]]
        %v943 = vstv %s941
        %v944 = vmul.f32 %v943, %v901
        %v945 = vmul.f32 %v943, %v908
        %v946 = vadd.f32 %v934, %v944
        %v947 = vadd.f32 %v935, %v945
        %v948 = vstv %s942
        %v949 = vmul.f32 %v948, %v901
        %v950 = vmul.f32 %v948, %v908
        %v951 = vadd.f32 %v939, %v949
        %v952 = vadd.f32 %v940, %v950
        %s953 = sld [smem:[#allocation4 + $0x10]]
        %s954 = sld [smem:[#allocation9 + $0x10]]
        %v955 = vstv %s953
        %v956 = vadd.f32 %v946, %v955
        %v957 = vadd.f32 %v947, %v955
        %v958 = vstv %s954
        %v959 = vadd.f32 %v951, %v958
        %v960 = vadd.f32 %v952, %v958
        %s961 = sld [smem:[#allocation4 + $0x17]]
        %s962 = sld [smem:[#allocation9 + $0x17]]
        %v963 = vstv %s961
        %v964 = vmul.f32 %v963, %v917
        %v965 = vmul.f32 %v963, %v918
        %v966 = vstv %s962
        %v967 = vmul.f32 %v966, %v917
        %v968 = vmul.f32 %v966, %v918
        %s969 = sld [smem:[#allocation4 + $0x16]]
        %s970 = sld [smem:[#allocation9 + $0x16]]
        %v971 = vstv %s969
        %v972 = vmul.f32 %v971, %v913
        %v973 = vmul.f32 %v971, %v914
        %v974 = vadd.f32 %v964, %v972
        %v975 = vadd.f32 %v965, %v973
        %v976 = vstv %s970
        %v977 = vmul.f32 %v976, %v913
        %v978 = vmul.f32 %v976, %v914
        %v979 = vadd.f32 %v967, %v977
        %v980 = vadd.f32 %v968, %v978
        %s981 = sld [smem:[#allocation4 + $0x15]]
        %s982 = sld [smem:[#allocation9 + $0x15]]
        %v983 = vstv %s981
        %v984 = vmul.f32 %v983, %v901
        %v985 = vmul.f32 %v983, %v908
        %v986 = vadd.f32 %v974, %v984
        %v987 = vadd.f32 %v975, %v985
        %v988 = vstv %s982
        %v989 = vmul.f32 %v988, %v901
        %v990 = vmul.f32 %v988, %v908
        %v991 = vadd.f32 %v979, %v989
        %v992 = vadd.f32 %v980, %v990
        %s993 = sld [smem:[#allocation4 + $0x14]]
        %s994 = sld [smem:[#allocation9 + $0x14]]
        %v995 = vstv %s993
        %v996 = vadd.f32 %v986, %v995
        %v997 = vadd.f32 %v987, %v995
        %v998 = vstv %s994
        %v999 = vadd.f32 %v991, %v998
        %v1000 = vadd.f32 %v992, %v998
        %v1001 = vmul.f32 %v860, %v996
        %v1002 = vmul.f32 %v867, %v997
        %v1003 = vadd.f32 %v956, %v1001
        %v1004 = vadd.f32 %v957, %v1002
        %v1005 = vmul.f32 %v860, %v999
        %v1006 = vmul.f32 %v867, %v1000
        %v1007 = vadd.f32 %v959, %v1005
        %v1008 = vadd.f32 %v960, %v1006
        %v1009 = vmul.f32 %v919, %v860
        %v1010 = vmul.f32 %v920, %v867
        %v1011 = vsub.f32 %v1009, 1.0
        %v1012 = vsub.f32 %v1010, 1.0
        %s1013 = sld [smem:[#allocation4 + $0x1b]]
        %s1014 = sld [smem:[#allocation9 + $0x1b]]
        %v1015 = vstv %s1013
        %v1016 = vmul.f32 %v1015, %v917
        %v1017 = vmul.f32 %v1015, %v918
        %v1018 = vstv %s1014
        %v1019 = vmul.f32 %v1018, %v917
        %v1020 = vmul.f32 %v1018, %v918
        %s1021 = sld [smem:[#allocation4 + $0x1a]]
        %s1022 = sld [smem:[#allocation9 + $0x1a]]
        %v1023 = vstv %s1021
        %v1024 = vmul.f32 %v1023, %v913
        %v1025 = vmul.f32 %v1023, %v914
        %v1026 = vadd.f32 %v1016, %v1024
        %v1027 = vadd.f32 %v1017, %v1025
        %v1028 = vstv %s1022
        %v1029 = vmul.f32 %v1028, %v913
        %v1030 = vmul.f32 %v1028, %v914
        %v1031 = vadd.f32 %v1019, %v1029
        %v1032 = vadd.f32 %v1020, %v1030
        %s1033 = sld [smem:[#allocation4 + $0x19]]
        %s1034 = sld [smem:[#allocation9 + $0x19]]
        %v1035 = vstv %s1033
        %v1036 = vmul.f32 %v1035, %v901
        %v1037 = vmul.f32 %v1035, %v908
        %v1038 = vadd.f32 %v1026, %v1036
        %v1039 = vadd.f32 %v1027, %v1037
        %v1040 = vstv %s1034
        %v1041 = vmul.f32 %v1040, %v901
        %v1042 = vmul.f32 %v1040, %v908
        %v1043 = vadd.f32 %v1031, %v1041
        %v1044 = vadd.f32 %v1032, %v1042
        %s1045 = sld [smem:[#allocation4 + $0x18]]
        %s1046 = sld [smem:[#allocation9 + $0x18]]
        %v1047 = vstv %s1045
        %v1048 = vadd.f32 %v1038, %v1047
        %v1049 = vadd.f32 %v1039, %v1047
        %v1050 = vstv %s1046
        %v1051 = vadd.f32 %v1043, %v1050
        %v1052 = vadd.f32 %v1044, %v1050
        %v1053 = vmul.f32 %v1011, %v1048
        %v1054 = vmul.f32 %v1012, %v1049
        %v1055 = vadd.f32 %v1003, %v1053
        %v1056 = vadd.f32 %v1004, %v1054
        %v1057 = vmul.f32 %v1011, %v1051
        %v1058 = vmul.f32 %v1012, %v1052
        %v1059 = vadd.f32 %v1007, %v1057
        %v1060 = vadd.f32 %v1008, %v1058
        %v1061 = vmul.f32 %v919, %v1011
        %v1062 = vmul.f32 %v920, %v1012
        %v1063 = vsub.f32 %v1061, %v860
        %v1064 = vsub.f32 %v1062, %v867
        %s1065 = sld [smem:[#allocation4 + $0x1f]]
        %s1066 = sld [smem:[#allocation9 + $0x1f]]
        %v1067 = vstv %s1065
        %v1068 = vmul.f32 %v1067, %v917
        %v1069 = vmul.f32 %v1067, %v918
        %v1070 = vstv %s1066
        %v1071 = vmul.f32 %v1070, %v917
        %v1072 = vmul.f32 %v1070, %v918
        %s1073 = sld [smem:[#allocation4 + $0x1e]]
        %s1074 = sld [smem:[#allocation9 + $0x1e]]
        %v1075 = vstv %s1073
        %v1076 = vmul.f32 %v1075, %v913
        %v1077 = vmul.f32 %v1075, %v914
        %v1078 = vadd.f32 %v1068, %v1076
        %v1079 = vadd.f32 %v1069, %v1077
        %v1080 = vstv %s1074
        %v1081 = vmul.f32 %v1080, %v913
        %v1082 = vmul.f32 %v1080, %v914
        %v1083 = vadd.f32 %v1071, %v1081
        %v1084 = vadd.f32 %v1072, %v1082
        %s1085 = sld [smem:[#allocation4 + $0x1d]]
        %s1086 = sld [smem:[#allocation9 + $0x1d]]
        %v1087 = vstv %s1085
        %v1088 = vmul.f32 %v1087, %v901
        %v1089 = vmul.f32 %v1087, %v908
        %v1090 = vadd.f32 %v1078, %v1088
        %v1091 = vadd.f32 %v1079, %v1089
        %v1092 = vstv %s1086
        %v1093 = vmul.f32 %v1092, %v901
        %v1094 = vmul.f32 %v1092, %v908
        %v1095 = vadd.f32 %v1083, %v1093
        %v1096 = vadd.f32 %v1084, %v1094
        %s1097 = sld [smem:[#allocation4 + $0x1c]]
        %s1098 = sld [smem:[#allocation9 + $0x1c]]
        %v1099 = vstv %s1097
        %v1100 = vadd.f32 %v1090, %v1099
        %v1101 = vadd.f32 %v1091, %v1099
        %v1102 = vstv %s1098
        %v1103 = vadd.f32 %v1095, %v1102
        %v1104 = vadd.f32 %v1096, %v1102
        %v1105 = vmul.f32 %v1063, %v1100
        %v1106 = vmul.f32 %v1064, %v1101
        %v1107 = vadd.f32 %v1055, %v1105
        %v1108 = vadd.f32 %v1056, %v1106
        %v1109 = vmul.f32 %v1063, %v1103
        %v1110 = vmul.f32 %v1064, %v1104
        %v1111 = vadd.f32 %v1059, %v1109
        %v1112 = vadd.f32 %v1060, %v1110
        %v1113 = vmul.f32 %v551, %v1107
        %v1114 = vmul.f32 %v552, %v1108
        %v1115 = vmul.f32 %v565, %v1111
        %v1116 = vmul.f32 %v566, %v1112
        %v1117 = vsub.f32 %v1113, %v1115
        %v1118 = vsub.f32 %v1114, %v1116
        %v1119 = vadd.f32 %v838, %v1117
        %v1120 = vadd.f32 %v839, %v1118
        %v1121 = vmul.f32 %v551, %v1111
        %v1122 = vmul.f32 %v552, %v1112
        %v1123 = vmul.f32 %v565, %v1107
        %v1124 = vmul.f32 %v566, %v1108
        %v1125 = vadd.f32 %v1121, %v1123
        %v1126 = vadd.f32 %v1122, %v1124
        %v1127 = vadd.f32 %v846, %v1125
        %v1128 = vadd.f32 %v847, %v1126
        %s1129 = sld [smem:[#allocation4 + $0x23]]
        %s1130 = sld [smem:[#allocation9 + $0x23]]
        %v1131 = vstv %s1129
        %v1132 = vmul.f32 %v1131, %v782
        %v1133 = vmul.f32 %v1131, %v783
        %v1134 = vstv %s1130
        %v1135 = vmul.f32 %v1134, %v782
        %v1136 = vmul.f32 %v1134, %v783
        %s1137 = sld [smem:[#allocation4 + $0x22]]
        %s1138 = sld [smem:[#allocation9 + $0x22]]
        %v1139 = vstv %s1137
        %v1140 = vmul.f32 %v1139, %v730
        %v1141 = vmul.f32 %v1139, %v731
        %v1142 = vadd.f32 %v1132, %v1140
        %v1143 = vadd.f32 %v1133, %v1141
        %v1144 = vstv %s1138
        %v1145 = vmul.f32 %v1144, %v730
        %v1146 = vmul.f32 %v1144, %v731
        %v1147 = vadd.f32 %v1135, %v1145
        %v1148 = vadd.f32 %v1136, %v1146
        %s1149 = sld [smem:[#allocation4 + $0x21]]
        %s1150 = sld [smem:[#allocation9 + $0x21]]
        %v1151 = vstv %s1149
        %v1152 = vmul.f32 %v1151, %v579
        %v1153 = vmul.f32 %v1151, %v586
        %v1154 = vadd.f32 %v1142, %v1152
        %v1155 = vadd.f32 %v1143, %v1153
        %v1156 = vstv %s1150
        %v1157 = vmul.f32 %v1156, %v579
        %v1158 = vmul.f32 %v1156, %v586
        %v1159 = vadd.f32 %v1147, %v1157
        %v1160 = vadd.f32 %v1148, %v1158
        %s1161 = sld [smem:[#allocation4 + $0x20]]
        %s1162 = sld [smem:[#allocation9 + $0x20]]
        %v1163 = vstv %s1161
        %v1164 = vadd.f32 %v1154, %v1163
        %v1165 = vadd.f32 %v1155, %v1163
        %v1166 = vstv %s1162
        %v1167 = vadd.f32 %v1159, %v1166
        %v1168 = vadd.f32 %v1160, %v1166
        %s1169 = sld [smem:[#allocation4 + $0x27]]
        %s1170 = sld [smem:[#allocation9 + $0x27]]
        %v1171 = vstv %s1169
        %v1172 = vmul.f32 %v1171, %v782
        %v1173 = vmul.f32 %v1171, %v783
        %v1174 = vstv %s1170
        %v1175 = vmul.f32 %v1174, %v782
        %v1176 = vmul.f32 %v1174, %v783
        %s1177 = sld [smem:[#allocation4 + $0x26]]
        %s1178 = sld [smem:[#allocation9 + $0x26]]
        %v1179 = vstv %s1177
        %v1180 = vmul.f32 %v1179, %v730
        %v1181 = vmul.f32 %v1179, %v731
        %v1182 = vadd.f32 %v1172, %v1180
        %v1183 = vadd.f32 %v1173, %v1181
        %v1184 = vstv %s1178
        %v1185 = vmul.f32 %v1184, %v730
        %v1186 = vmul.f32 %v1184, %v731
        %v1187 = vadd.f32 %v1175, %v1185
        %v1188 = vadd.f32 %v1176, %v1186
        %s1189 = sld [smem:[#allocation4 + $0x25]]
        %s1190 = sld [smem:[#allocation9 + $0x25]]
        %v1191 = vstv %s1189
        %v1192 = vmul.f32 %v1191, %v579
        %v1193 = vmul.f32 %v1191, %v586
        %v1194 = vadd.f32 %v1182, %v1192
        %v1195 = vadd.f32 %v1183, %v1193
        %v1196 = vstv %s1190
        %v1197 = vmul.f32 %v1196, %v579
        %v1198 = vmul.f32 %v1196, %v586
        %v1199 = vadd.f32 %v1187, %v1197
        %v1200 = vadd.f32 %v1188, %v1198
        %s1201 = sld [smem:[#allocation4 + $0x24]]
        %s1202 = sld [smem:[#allocation9 + $0x24]]
        %v1203 = vstv %s1201
        %v1204 = vadd.f32 %v1194, %v1203
        %v1205 = vadd.f32 %v1195, %v1203
        %v1206 = vstv %s1202
        %v1207 = vadd.f32 %v1199, %v1206
        %v1208 = vadd.f32 %v1200, %v1206
        %v1209 = vmul.f32 %v620, %v1204
        %v1210 = vmul.f32 %v627, %v1205
        %v1211 = vadd.f32 %v1164, %v1209
        %v1212 = vadd.f32 %v1165, %v1210
        %v1213 = vmul.f32 %v620, %v1207
        %v1214 = vmul.f32 %v627, %v1208
        %v1215 = vadd.f32 %v1167, %v1213
        %v1216 = vadd.f32 %v1168, %v1214
        %s1217 = sld [smem:[#allocation4 + $0x2b]]
        %s1218 = sld [smem:[#allocation9 + $0x2b]]
        %v1219 = vstv %s1217
        %v1220 = vmul.f32 %v1219, %v782
        %v1221 = vmul.f32 %v1219, %v783
        %v1222 = vstv %s1218
        %v1223 = vmul.f32 %v1222, %v782
        %v1224 = vmul.f32 %v1222, %v783
        %s1225 = sld [smem:[#allocation4 + $0x2a]]
        %s1226 = sld [smem:[#allocation9 + $0x2a]]
        %v1227 = vstv %s1225
        %v1228 = vmul.f32 %v1227, %v730
        %v1229 = vmul.f32 %v1227, %v731
        %v1230 = vadd.f32 %v1220, %v1228
        %v1231 = vadd.f32 %v1221, %v1229
        %v1232 = vstv %s1226
        %v1233 = vmul.f32 %v1232, %v730
        %v1234 = vmul.f32 %v1232, %v731
        %v1235 = vadd.f32 %v1223, %v1233
        %v1236 = vadd.f32 %v1224, %v1234
        %s1237 = sld [smem:[#allocation4 + $0x29]]
        %s1238 = sld [smem:[#allocation9 + $0x29]]
        %v1239 = vstv %s1237
        %v1240 = vmul.f32 %v1239, %v579
        %v1241 = vmul.f32 %v1239, %v586
        %v1242 = vadd.f32 %v1230, %v1240
        %v1243 = vadd.f32 %v1231, %v1241
        %v1244 = vstv %s1238
        %v1245 = vmul.f32 %v1244, %v579
        %v1246 = vmul.f32 %v1244, %v586
        %v1247 = vadd.f32 %v1235, %v1245
        %v1248 = vadd.f32 %v1236, %v1246
        %s1249 = sld [smem:[#allocation4 + $0x28]]
        %s1250 = sld [smem:[#allocation9 + $0x28]]
        %v1251 = vstv %s1249
        %v1252 = vadd.f32 %v1242, %v1251
        %v1253 = vadd.f32 %v1243, %v1251
        %v1254 = vstv %s1250
        %v1255 = vadd.f32 %v1247, %v1254
        %v1256 = vadd.f32 %v1248, %v1254
        %v1257 = vmul.f32 %v632, %v1252
        %v1258 = vmul.f32 %v633, %v1253
        %v1259 = vadd.f32 %v1211, %v1257
        %v1260 = vadd.f32 %v1212, %v1258
        %v1261 = vmul.f32 %v632, %v1255
        %v1262 = vmul.f32 %v633, %v1256
        %v1263 = vadd.f32 %v1215, %v1261
        %v1264 = vadd.f32 %v1216, %v1262
        %s1265 = sld [smem:[#allocation4 + $0x2f]]
        %s1266 = sld [smem:[#allocation9 + $0x2f]]
        %v1267 = vstv %s1265
        %v1268 = vmul.f32 %v1267, %v782
        %v1269 = vmul.f32 %v1267, %v783
        %v1270 = vstv %s1266
        %v1271 = vmul.f32 %v1270, %v782
        %v1272 = vmul.f32 %v1270, %v783
        %s1273 = sld [smem:[#allocation4 + $0x2e]]
        %s1274 = sld [smem:[#allocation9 + $0x2e]]
        %v1275 = vstv %s1273
        %v1276 = vmul.f32 %v1275, %v730
        %v1277 = vmul.f32 %v1275, %v731
        %v1278 = vadd.f32 %v1268, %v1276
        %v1279 = vadd.f32 %v1269, %v1277
        %v1280 = vstv %s1274
        %v1281 = vmul.f32 %v1280, %v730
        %v1282 = vmul.f32 %v1280, %v731
        %v1283 = vadd.f32 %v1271, %v1281
        %v1284 = vadd.f32 %v1272, %v1282
        %s1285 = sld [smem:[#allocation4 + $0x2d]]
        %s1286 = sld [smem:[#allocation9 + $0x2d]]
        %v1287 = vstv %s1285
        %v1288 = vmul.f32 %v1287, %v579
        %v1289 = vmul.f32 %v1287, %v586
        %v1290 = vadd.f32 %v1278, %v1288
        %v1291 = vadd.f32 %v1279, %v1289
        %v1292 = vstv %s1286
        %v1293 = vmul.f32 %v1292, %v579
        %v1294 = vmul.f32 %v1292, %v586
        %v1295 = vadd.f32 %v1283, %v1293
        %v1296 = vadd.f32 %v1284, %v1294
        %s1297 = sld [smem:[#allocation4 + $0x2c]]
        %s1298 = sld [smem:[#allocation9 + $0x2c]]
        %v1299 = vstv %s1297
        %v1300 = vadd.f32 %v1290, %v1299
        %v1301 = vadd.f32 %v1291, %v1299
        %v1302 = vstv %s1298
        %v1303 = vadd.f32 %v1295, %v1302
        %v1304 = vadd.f32 %v1296, %v1302
        %v1305 = vmul.f32 %v636, %v1300
        %v1306 = vmul.f32 %v637, %v1301
        %v1307 = vadd.f32 %v1259, %v1305
        %v1308 = vadd.f32 %v1260, %v1306
        %v1309 = vmul.f32 %v636, %v1303
        %v1310 = vmul.f32 %v637, %v1304
        %v1311 = vadd.f32 %v1263, %v1309
        %v1312 = vadd.f32 %v1264, %v1310
        %v1313 = vmul.f32 %v596, %v1307
        %v1314 = vmul.f32 %v597, %v1308
        %v1315 = vmul.f32 %v606, %v1311
        %v1316 = vmul.f32 %v607, %v1312
        %v1317 = vsub.f32 %v1313, %v1315
        %v1318 = vsub.f32 %v1314, %v1316
        %v1319 = vadd.f32 %v1119, %v1317
        %v1320 = vadd.f32 %v1120, %v1318
        %v1321 = vmul.f32 %v596, %v1311
        %v1322 = vmul.f32 %v597, %v1312
        %v1323 = vmul.f32 %v606, %v1307
        %v1324 = vmul.f32 %v607, %v1308
        %v1325 = vadd.f32 %v1321, %v1323
        %v1326 = vadd.f32 %v1322, %v1324
        %v1327 = vadd.f32 %v1127, %v1325
        %v1328 = vadd.f32 %v1128, %v1326
        %1329 = vst [vmem:[%s492] sm:$0xff] %v1319
        %1330 = vst [vmem:[%s492 + $0x8] sm:$0xff] %v1320
        %1331 = vst [vmem:[%s499] sm:$0xff] %v1327
        %1332 = vst [vmem:[%s499 + $0x8] sm:$0xff] %v1328
        %s1333 = sand.u32 %s226, 1
        %s1334 = scalar_lea.sflag [#allocation6], %s1333
        %s1335 = sand.u32 %s226, 1
        %s1336 = smul.addr %s1335, 16
        %s1337 = scalar_lea.vmem [#allocation16], %s1336
        %s1338 = sand.u32 %s256, 1
        %s1339 = scalar_lea.sflag [#allocation18], %s1338
        %s1340 = sand.u32 %s256, 1
        %s1341 = smul.addr %s1340, 16
        %s1342 = scalar_lea.vmem [#allocation17], %s1341
        // Predicated region
        $region69: #{tpu_custom_call.1} parent=43 // pred_check
          %p1343 = pneg %p236
        $region70: #{tpu_custom_call.1} parent=43 // pred_check_branch
          %1345 = sbr.rel (%p1343) target = $region72
        $region71: #{tpu_custom_call.1} parent=43 // pred_region
          %s1346 = smul.u32 %s40, 4
          %s1347 = sadd.s32 %s1346, %s41
          %s1348 = smul.u32 2, %s1347
          %s1350 = ssub.s32 256, 256
          %1351 = vsyncadd %s1334, %s1350
          %s1352 = smul.addr %s1348, 128
          %s1353 = scalar_lea.hbm %s6, %s1352
          %s1354 = sshll.u32 %s1337, 4
          %s1355 = int_to_ptr.vmem [resolvable:$true] %s1354
          %1360 = dma.vmem_to_hbm [thread:$0]  %s1355, 256, %s1353, %s1334, 128, 128, 8
        $region72: #{tpu_custom_call.1} parent=43 // pred_fallthru
          _
        // Predicated region
        $region73: #{tpu_custom_call.1} parent=43 // pred_check
          %p1361 = pneg %p266
        $region74: #{tpu_custom_call.1} parent=43 // pred_check_branch
          %1363 = sbr.rel (%p1361) target = $region76
        $region75: #{tpu_custom_call.1} parent=43 // pred_region
          %s1364 = smul.u32 %s40, 4
          %s1365 = sadd.s32 %s1364, %s41
          %s1366 = smul.u32 2, %s1365
          %s1368 = ssub.s32 256, 256
          %1369 = vsyncadd %s1339, %s1368
          %s1370 = smul.addr %s1366, 128
          %s1371 = scalar_lea.hbm %s7, %s1370
          %s1372 = sshll.u32 %s1342, 4
          %s1373 = int_to_ptr.vmem [resolvable:$true] %s1372
          %1378 = dma.vmem_to_hbm [thread:$0]  %s1373, 256, %s1371, %s1339, 128, 128, 8
        $region76: #{tpu_custom_call.1} parent=43 // pred_fallthru
          _
      $region44: #{tpu_custom_call.1} parent=5 // pred_fallthru
        _
      %p1379 = scmp.le.s32.totalorder 2, %s31
      // Predicated region
      $region77: #{tpu_custom_call.1} parent=5 // pred_check
        %p1380 = pneg %p1379
      $region78: #{tpu_custom_call.1} parent=5 // pred_check_branch
        %1382 = sbr.rel (%p1380) target = $region80
      $region79: #{tpu_custom_call.1} parent=5 // pred_region
        %s1383 = ssub.s32 %s31, 2
        // Predicated region
        $region81: #{tpu_custom_call.1} parent=79 // pred_check
          %p1384 = pneg %p242
        $region82: #{tpu_custom_call.1} parent=79 // pred_check_branch
          %1386 = sbr.rel (%p1384) target = $region84
        $region83: #{tpu_custom_call.1} parent=79 // pred_region
          %s1387 = sand.u32 %s227, 1
          %s1388 = scalar_lea.sflag [#allocation6], %s1387
          %s1389 = sand.u32 %s227, 1
          %s1390 = smul.addr %s1389, 16
          %s1391 = scalar_lea.vmem [#allocation16], %s1390
          %1392 = dma.done %s1388, 256
        $region84: #{tpu_custom_call.1} parent=79 // pred_fallthru
          _
        // Predicated region
        $region85: #{tpu_custom_call.1} parent=79 // pred_check
          %p1393 = pneg %p272
        $region86: #{tpu_custom_call.1} parent=79 // pred_check_branch
          %1395 = sbr.rel (%p1393) target = $region88
        $region87: #{tpu_custom_call.1} parent=79 // pred_region
          %s1396 = sand.u32 %s257, 1
          %s1397 = scalar_lea.sflag [#allocation18], %s1396
          %s1398 = sand.u32 %s257, 1
          %s1399 = smul.addr %s1398, 16
          %s1400 = scalar_lea.vmem [#allocation17], %s1399
          %1401 = dma.done %s1397, 256
        $region88: #{tpu_custom_call.1} parent=79 // pred_fallthru
          _
      $region80: #{tpu_custom_call.1} parent=5 // pred_fallthru
        _
    $region6: #{tpu_custom_call.1} parent=1 // loop_footer
      %s35 = sadd.s32 1, %s31
    $region7: #{tpu_custom_call.1} parent=1 // loop_footer_branch
      %30 = sbr.rel target = $region3
    $region8: #{tpu_custom_call.1} parent=1 // loop_exit
      _
    %1402 = vsyncpa [#allocation5], 1
    %s1403 = scalar_lea.sflag [#allocation5], 1
    %1404 = vsyncpa %s1403, 1
    %1405 = vsyncpa [#allocation12], 1
    %s1406 = scalar_lea.sflag [#allocation12], 1
    %1407 = vsyncpa %s1406, 1
    %1408 = vsyncpa [#allocation15], 1
    %s1409 = scalar_lea.sflag [#allocation15], 1
    %1410 = vsyncpa %s1409, 1
    %1411 = vsyncpa [#allocation6], 1
    %s1412 = scalar_lea.sflag [#allocation6], 1
    %1413 = vsyncpa %s1412, 1
    %1414 = vsyncpa [#allocation18], 1
    %s1415 = scalar_lea.sflag [#allocation18], 1
    %1416 = vsyncpa %s1415, 1
    %1417 = vsyncpa [#allocation7], 1
    %s1418 = scalar_lea.sflag [#allocation7], 1
    %1419 = vsyncpa %s1418, 1
    %1420 = vsyncpa [#allocation8], 1
    %s1421 = scalar_lea.sflag [#allocation8], 1
    %1422 = vsyncpa %s1421, 1

</llo_original>
